<compile_context>
chip_gen: v7x
topology: tpu7x:2x2x1
jax: 0.10.0
libtpu: 0.0.40
codegen_flags: <defaults>
</compile_context>

<pallas_src>
import functools

import jax
import jax.numpy as jnp
from jax.experimental import pallas as pl
from jax.experimental.pallas import tpu as pltpu


_LANE = 128          # native lane-tile width
EPS = 1e-5           # PyTorch nn.GroupNorm default


def _tensorcores_per_chip():
    """2 on v7x-class chips (2 TCs/chip), else 1 (v5e/v6e are single-TC)."""
    try:
        kind = jax.devices()[0].device_kind.lower()
    except Exception:
        return 1
    return 2 if ("v7" in kind or "tpu7" in kind) else 1


def _conv_gn_kernel(x_ref, w_ref, b_ref, gamma_ref, beta_ref, mask_ref,
                    red_ref, exp_ref, out_ref, slab_ref, *,
                    shifts, c_pad, l_pad, nb, inv_count, eps):
    """Processes `nb` batch samples per grid step.

    x_ref:     (nb, C_pad, L_ext)   zero-padded input, padded spatial on lanes
    w_ref:     (F, K*K*C_pad)       conv weights, contraction = tap-major, channel-minor
    b_ref:     (F, 1)               conv bias
    gamma_ref: (F, 1)               GroupNorm weight
    beta_ref:  (F, 1)               GroupNorm bias
    mask_ref:  (1, L_pad)           1.0 on lanes that are valid conv outputs
    red_ref:   (G, F)               one-hot group-reduce matrix
    exp_ref:   (F, G)               one-hot group-expand matrix (= reduce.T)
    out_ref:   (nb, F, L_pad)       conv + GroupNorm output at padded positions
    slab_ref:  (K*K*C_pad, L_pad)   VMEM scratch: stacked shifted input views
    """
    mask = mask_ref[...]                                             # (1, L_pad)
    red = red_ref[...]                                               # (G, F)
    expn = exp_ref[...]                                              # (F, G)
    w = w_ref[...]                                                   # (F, KKC)

    for n in range(nb):                                              # static
        # ---- build the im2col slab in VMEM (tile-aligned sublane stores) ----
        for kk, shift in enumerate(shifts):                          # static
            slab_ref[kk * c_pad:(kk + 1) * c_pad, :] = (
                x_ref[n, :, pl.ds(shift, l_pad)])

        # ---- conv: single (F, K*K*C_pad) @ (K*K*C_pad, L_pad) MXU matmul ----
        y = jnp.dot(w, slab_ref[...], preferred_element_type=jnp.float32)
        y = y + b_ref[...]                                           # (F, L_pad)

        # ---- GroupNorm: two-pass, lane-reduce FIRST, then tiny group matmuls
        #      (done at the native 128-lane width to stay lane-dense) ----
        f = y.shape[0]
        s_ch = jnp.sum(y * mask, axis=1, keepdims=True)              # (F, 1)
        s_b = jnp.broadcast_to(s_ch, (f, _LANE))                     # (F, 128)
        mean = jnp.dot(expn, jnp.dot(red, s_b,
                                     preferred_element_type=jnp.float32),
                       preferred_element_type=jnp.float32)[:, :1] * inv_count

        c = y - mean                                                 # (F, L_pad)
        ss_ch = jnp.sum(c * c * mask, axis=1, keepdims=True)         # (F, 1)
        ss_b = jnp.broadcast_to(ss_ch, (f, _LANE))                   # (F, 128)
        var = jnp.dot(expn, jnp.dot(red, ss_b,
                                    preferred_element_type=jnp.float32),
                      preferred_element_type=jnp.float32)[:, :1] * inv_count
        inv_std = jax.lax.rsqrt(var + eps)                           # (F, 1)

        out = c * (inv_std * gamma_ref[...]) + beta_ref[...]         # (F, L_pad)
        out_ref[n] = out.astype(out_ref.dtype)


@functools.partial(jax.jit, static_argnames=("k", "stride", "padding",
                                             "dilation", "n_groups"))
def conv2d_groupnorm(x_nchw, weight, bias, gamma, beta, *,
                     k, stride, padding, dilation, n_groups):
    """Forward of conv2DGroupNorm. x_nchw: (N, C, H, W) -> (N, F, H_out, W_out)."""
    N, C, H, W = x_nchw.shape
    F = weight.shape[0]
    assert F % n_groups == 0
    cpg = F // n_groups

    H_out = (H + 2 * padding - dilation * (k - 1) - 1) // stride + 1
    W_out = (W + 2 * padding - dilation * (k - 1) - 1) // stride + 1
    Hp = H + 2 * padding
    Wp = W + 2 * padding
    L = Hp * Wp
    L_pad = -(-L // _LANE) * _LANE            # lane-dense flattened width
    C_pad = -(-C // 8) * 8                    # full 8-sublane channel tiles

    # Flat lane shift per tap (kh outer, kw inner).
    shifts = tuple((kh * dilation) * Wp + kw * dilation
                   for kh in range(k) for kw in range(k))
    max_shift = shifts[-1] if shifts else 0
    # Enough zero slack rows so every shifted length-L_pad lane slice stays in
    # bounds (the extra lanes only ever read zeros).
    extra_rows = -(-(max_shift + L_pad - L) // Wp)
    L_ext = (Hp + extra_rows) * Wp

    # One zero-pad of the NCHW input (channels -> C_pad, conv spatial padding
    # + slack rows); the flattening reshape is row-major contiguous (free).
    x_pad = jnp.pad(x_nchw, ((0, 0), (0, C_pad - C),
                             (padding, padding + extra_rows),
                             (padding, padding)))
    x_flat = x_pad.reshape(N, C_pad, L_ext)

    # Conv weights (F, C, kH, kW) -> (F, K*K*C_pad); contraction index
    # = (kh*K + kw)*C_pad + c, matching the slab layout built in the kernel.
    w_pad = jnp.pad(weight, ((0, 0), (0, C_pad - C), (0, 0), (0, 0)))
    w_flat = jnp.transpose(w_pad, (0, 2, 3, 1)).reshape(F, k * k * C_pad)

    # Validity mask over the L_pad flat lanes (zero on padding lanes so the
    # GroupNorm statistics only count real conv-output positions).
    idx = jnp.arange(L_pad, dtype=jnp.int32)
    rows = idx // Wp
    cols = idx % Wp
    valid = ((idx < L)
             & ((rows % stride) == 0) & (rows < H_out * stride)
             & ((cols % stride) == 0) & (cols < W_out * stride))
    mask = valid.astype(jnp.float32).reshape(1, L_pad)

    # One-hot group reduce / expand matrices (contiguous channel groups).
    ch_group = jnp.arange(F, dtype=jnp.int32) // cpg
    red = (jnp.arange(n_groups, dtype=jnp.int32)[:, None]
           == ch_group[None, :]).astype(jnp.float32)       # (G, F)
    expand = red.T                                          # (F, G)

    inv_count = 1.0 / float(H_out * W_out * cpg)            # static, baked in

    # Generation-aware grid: one sample per step on 2-TC chips (v7x) so both
    # TensorCores are busy; whole batch in a single step on 1-TC chips
    # (v5e/v6e) to drop the fixed per-grid-step pipeline overhead.
    nb = 1 if (_tensorcores_per_chip() >= 2 and N > 1) else N
    grid = (N // nb,)

    kernel = functools.partial(_conv_gn_kernel, shifts=shifts, c_pad=C_pad,
                               l_pad=L_pad, nb=nb, inv_count=inv_count,
                               eps=EPS)

    y_full = pl.pallas_call(
        kernel,
        out_shape=jax.ShapeDtypeStruct((N, F, L_pad), jnp.float32),
        grid_spec=pltpu.PrefetchScalarGridSpec(
            num_scalar_prefetch=0,
            grid=grid,
            in_specs=[
                pl.BlockSpec((nb, C_pad, L_ext), lambda n: (n, 0, 0)),
                pl.BlockSpec((F, k * k * C_pad), lambda n: (0, 0)),
                pl.BlockSpec((F, 1), lambda n: (0, 0)),
                pl.BlockSpec((F, 1), lambda n: (0, 0)),
                pl.BlockSpec((F, 1), lambda n: (0, 0)),
                pl.BlockSpec((1, L_pad), lambda n: (0, 0)),
                pl.BlockSpec((n_groups, F), lambda n: (0, 0)),
                pl.BlockSpec((F, n_groups), lambda n: (0, 0)),
            ],
            out_specs=pl.BlockSpec((nb, F, L_pad), lambda n: (n, 0, 0)),
            scratch_shapes=[pltpu.VMEM((k * k * C_pad, L_pad), jnp.float32)],
        ),
        compiler_params=pltpu.CompilerParams(
            dimension_semantics=("parallel",)),
    )(x_flat, w_flat, bias.reshape(F, 1), gamma.reshape(F, 1),
      beta.reshape(F, 1), mask, red, expand)

    # (N, F, L_pad) is already NCHW-ordered: drop the lane padding (contiguous
    # prefix slice), free reshape, then a cheap strided slice keeps only the
    # valid conv-output positions. No layout transposes anywhere.
    y4 = y_full[:, :, :L].reshape(N, F, Hp, Wp)
    out = y4[:, :,
             : (H_out - 1) * stride + 1 : stride,
             : (W_out - 1) * stride + 1 : stride]
    return out


def _reference(x_nchw, weight, bias, gamma, beta, *, stride, padding,
               dilation, n_groups):
    """Pure-JAX reference (conv + GroupNorm) for a sanity check."""
    y = jax.lax.conv_general_dilated(
        x_nchw, weight, window_strides=(stride, stride),
        padding=[(padding, padding), (padding, padding)],
        rhs_dilation=(dilation, dilation),
        dimension_numbers=("NCHW", "OIHW", "NCHW"))
    y = y + bias[None, :, None, None]
    N, F, H, W = y.shape
    yg = y.reshape(N, n_groups, F // n_groups, H, W)
    mean = yg.mean(axis=(2, 3, 4), keepdims=True)
    var = ((yg - mean) ** 2).mean(axis=(2, 3, 4), keepdims=True)
    yn = ((yg - mean) / jnp.sqrt(var + EPS)).reshape(N, F, H, W)
    return yn * gamma[None, :, None, None] + beta[None, :, None, None]


if __name__ == "__main__":
    # Module config: conv2DGroupNorm(in_channels=4, n_filters=32, k_size=3,
    #                                stride=1, padding=1, bias=True,
    #                                dilation=1, n_groups=16)
    N, C, H, W = 2, 4, 16, 16
    F, K, STRIDE, PAD, DIL, NG = 32, 3, 1, 1, 1, 16

    key = jax.random.PRNGKey(0)
    kx, kw, kb = jax.random.split(key, 3)
    x = jax.random.normal(kx, (N, C, H, W), dtype=jnp.float32)
    weight = 0.1 * jax.random.normal(kw, (F, C, K, K), dtype=jnp.float32)
    bias = 0.1 * jax.random.normal(kb, (F,), dtype=jnp.float32)
    gamma = jnp.ones((F,), dtype=jnp.float32)   # GroupNorm default init
    beta = jnp.zeros((F,), dtype=jnp.float32)

    out = conv2d_groupnorm(x, weight, bias, gamma, beta,
                           k=K, stride=STRIDE, padding=PAD,
                           dilation=DIL, n_groups=NG)
    out = jax.block_until_ready(out)

    ref = _reference(x, weight, bias, gamma, beta, stride=STRIDE,
                     padding=PAD, dilation=DIL, n_groups=NG)
    assert out.shape == (N, F, H, W), out.shape
    err = float(jnp.max(jnp.abs(out - ref)))
    assert err < 1e-4, err
    print("KERNEL_OK")
</pallas_src>

<mosaic_0001>
module attributes {stable_mosaic.version = 11 : i64} {
  func.func @_conv_gn_kernel(%arg0: i32, %arg1: memref<2x8x432xf32, #tpu.memory_space<vmem>>, %arg2: memref<32x72xf32, #tpu.memory_space<vmem>>, %arg3: memref<32x1xf32, #tpu.memory_space<vmem>>, %arg4: memref<32x1xf32, #tpu.memory_space<vmem>>, %arg5: memref<32x1xf32, #tpu.memory_space<vmem>>, %arg6: memref<1x384xf32, #tpu.memory_space<vmem>>, %arg7: memref<16x32xf32, #tpu.memory_space<vmem>>, %arg8: memref<32x16xf32, #tpu.memory_space<vmem>>, %arg9: memref<2x32x384xf32, #tpu.memory_space<vmem>>, %arg10: memref<72x384xf32, #tpu.memory_space<vmem>>) attributes {dimension_semantics = [#tpu.dimension_semantics<parallel>], iteration_bounds = array<i64: 1>, scalar_prefetch = 0 : i64, scratch_operands = 1 : i64, tpu.core_type = #tpu.core_type<tc>, window_params = [{transform_indices = @transform_0, window_bounds = array<i64: 2, 8, 432>}, {pipeline_mode = #tpu.pipeline_mode<synchronous>, transform_indices = @transform_1, window_bounds = array<i64: 32, 72>}, {pipeline_mode = #tpu.pipeline_mode<synchronous>, transform_indices = @transform_2, window_bounds = array<i64: 32, 1>}, {pipeline_mode = #tpu.pipeline_mode<synchronous>, transform_indices = @transform_3, window_bounds = array<i64: 32, 1>}, {pipeline_mode = #tpu.pipeline_mode<synchronous>, transform_indices = @transform_4, window_bounds = array<i64: 32, 1>}, {pipeline_mode = #tpu.pipeline_mode<synchronous>, transform_indices = @transform_5, window_bounds = array<i64: 1, 384>}, {pipeline_mode = #tpu.pipeline_mode<synchronous>, transform_indices = @transform_6, window_bounds = array<i64: 16, 32>}, {pipeline_mode = #tpu.pipeline_mode<synchronous>, transform_indices = @transform_7, window_bounds = array<i64: 32, 16>}, {transform_indices = @transform_8, window_bounds = array<i64: 2, 32, 384>}]} {
    %c0 = arith.constant 0 : index
    %c0_0 = arith.constant 0 : index
    %0 = vector.load %arg6[%c0, %c0_0] : memref<1x384xf32, #tpu.memory_space<vmem>>, vector<1x384xf32>
    %c0_1 = arith.constant 0 : index
    %c0_2 = arith.constant 0 : index
    %1 = vector.load %arg7[%c0_1, %c0_2] : memref<16x32xf32, #tpu.memory_space<vmem>>, vector<16x32xf32>
    %c0_3 = arith.constant 0 : index
    %c0_4 = arith.constant 0 : index
    %2 = vector.load %arg8[%c0_3, %c0_4] : memref<32x16xf32, #tpu.memory_space<vmem>>, vector<32x16xf32>
    %c0_5 = arith.constant 0 : index
    %c0_6 = arith.constant 0 : index
    %3 = vector.load %arg2[%c0_5, %c0_6] : memref<32x72xf32, #tpu.memory_space<vmem>>, vector<32x72xf32>
    %c0_7 = arith.constant 0 : index
    %c0_8 = arith.constant 0 : index
    %c0_9 = arith.constant 0 : index
    %4 = vector.load %arg1[%c0_7, %c0_8, %c0_9] : memref<2x8x432xf32, #tpu.memory_space<vmem>>, vector<1x8x384xf32>
    %5 = vector.shape_cast %4 : vector<1x8x384xf32> to vector<8x384xf32>
    %c0_10 = arith.constant 0 : index
    %c0_11 = arith.constant 0 : index
    %6 = vector.load %arg10[%c0_10, %c0_11] : memref<72x384xf32, #tpu.memory_space<vmem>>, vector<8x384xf32>
    tpu.vector_store %arg10[%c0_10, %c0_11], %5 {strides = array<i32>} : memref<72x384xf32, #tpu.memory_space<vmem>>, vector<8x384xf32>,
    %c0_12 = arith.constant 0 : index
    %c0_13 = arith.constant 0 : index
    %c1 = arith.constant 1 : index
    %7 = vector.load %arg1[%c0_12, %c0_13, %c1] : memref<2x8x432xf32, #tpu.memory_space<vmem>>, vector<1x8x384xf32>
    %8 = vector.shape_cast %7 : vector<1x8x384xf32> to vector<8x384xf32>
    %c8 = arith.constant 8 : index
    %c0_14 = arith.constant 0 : index
    %9 = vector.load %arg10[%c8, %c0_14] : memref<72x384xf32, #tpu.memory_space<vmem>>, vector<8x384xf32>
    tpu.vector_store %arg10[%c8, %c0_14], %8 {strides = array<i32>} : memref<72x384xf32, #tpu.memory_space<vmem>>, vector<8x384xf32>,
    %c0_15 = arith.constant 0 : index
    %c0_16 = arith.constant 0 : index
    %c2 = arith.constant 2 : index
    %10 = vector.load %arg1[%c0_15, %c0_16, %c2] : memref<2x8x432xf32, #tpu.memory_space<vmem>>, vector<1x8x384xf32>
    %11 = vector.shape_cast %10 : vector<1x8x384xf32> to vector<8x384xf32>
    %c16 = arith.constant 16 : index
    %c0_17 = arith.constant 0 : index
    %12 = vector.load %arg10[%c16, %c0_17] : memref<72x384xf32, #tpu.memory_space<vmem>>, vector<8x384xf32>
    tpu.vector_store %arg10[%c16, %c0_17], %11 {strides = array<i32>} : memref<72x384xf32, #tpu.memory_space<vmem>>, vector<8x384xf32>,
    %c0_18 = arith.constant 0 : index
    %c0_19 = arith.constant 0 : index
    %c18 = arith.constant 18 : index
    %13 = vector.load %arg1[%c0_18, %c0_19, %c18] : memref<2x8x432xf32, #tpu.memory_space<vmem>>, vector<1x8x384xf32>
    %14 = vector.shape_cast %13 : vector<1x8x384xf32> to vector<8x384xf32>
    %c24 = arith.constant 24 : index
    %c0_20 = arith.constant 0 : index
    %15 = vector.load %arg10[%c24, %c0_20] : memref<72x384xf32, #tpu.memory_space<vmem>>, vector<8x384xf32>
    tpu.vector_store %arg10[%c24, %c0_20], %14 {strides = array<i32>} : memref<72x384xf32, #tpu.memory_space<vmem>>, vector<8x384xf32>,
    %c0_21 = arith.constant 0 : index
    %c0_22 = arith.constant 0 : index
    %c19 = arith.constant 19 : index
    %16 = vector.load %arg1[%c0_21, %c0_22, %c19] : memref<2x8x432xf32, #tpu.memory_space<vmem>>, vector<1x8x384xf32>
    %17 = vector.shape_cast %16 : vector<1x8x384xf32> to vector<8x384xf32>
    %c32 = arith.constant 32 : index
    %c0_23 = arith.constant 0 : index
    %18 = vector.load %arg10[%c32, %c0_23] : memref<72x384xf32, #tpu.memory_space<vmem>>, vector<8x384xf32>
    tpu.vector_store %arg10[%c32, %c0_23], %17 {strides = array<i32>} : memref<72x384xf32, #tpu.memory_space<vmem>>, vector<8x384xf32>,
    %c0_24 = arith.constant 0 : index
    %c0_25 = arith.constant 0 : index
    %c20 = arith.constant 20 : index
    %19 = vector.load %arg1[%c0_24, %c0_25, %c20] : memref<2x8x432xf32, #tpu.memory_space<vmem>>, vector<1x8x384xf32>
    %20 = vector.shape_cast %19 : vector<1x8x384xf32> to vector<8x384xf32>
    %c40 = arith.constant 40 : index
    %c0_26 = arith.constant 0 : index
    %21 = vector.load %arg10[%c40, %c0_26] : memref<72x384xf32, #tpu.memory_space<vmem>>, vector<8x384xf32>
    tpu.vector_store %arg10[%c40, %c0_26], %20 {strides = array<i32>} : memref<72x384xf32, #tpu.memory_space<vmem>>, vector<8x384xf32>,
    %c0_27 = arith.constant 0 : index
    %c0_28 = arith.constant 0 : index
    %c36 = arith.constant 36 : index
    %22 = vector.load %arg1[%c0_27, %c0_28, %c36] : memref<2x8x432xf32, #tpu.memory_space<vmem>>, vector<1x8x384xf32>
    %23 = vector.shape_cast %22 : vector<1x8x384xf32> to vector<8x384xf32>
    %c48 = arith.constant 48 : index
    %c0_29 = arith.constant 0 : index
    %24 = vector.load %arg10[%c48, %c0_29] : memref<72x384xf32, #tpu.memory_space<vmem>>, vector<8x384xf32>
    tpu.vector_store %arg10[%c48, %c0_29], %23 {strides = array<i32>} : memref<72x384xf32, #tpu.memory_space<vmem>>, vector<8x384xf32>,
    %c0_30 = arith.constant 0 : index
    %c0_31 = arith.constant 0 : index
    %c37 = arith.constant 37 : index
    %25 = vector.load %arg1[%c0_30, %c0_31, %c37] : memref<2x8x432xf32, #tpu.memory_space<vmem>>, vector<1x8x384xf32>
    %26 = vector.shape_cast %25 : vector<1x8x384xf32> to vector<8x384xf32>
    %c56 = arith.constant 56 : index
    %c0_32 = arith.constant 0 : index
    %27 = vector.load %arg10[%c56, %c0_32] : memref<72x384xf32, #tpu.memory_space<vmem>>, vector<8x384xf32>
    tpu.vector_store %arg10[%c56, %c0_32], %26 {strides = array<i32>} : memref<72x384xf32, #tpu.memory_space<vmem>>, vector<8x384xf32>,
    %c0_33 = arith.constant 0 : index
    %c0_34 = arith.constant 0 : index
    %c38 = arith.constant 38 : index
    %28 = vector.load %arg1[%c0_33, %c0_34, %c38] : memref<2x8x432xf32, #tpu.memory_space<vmem>>, vector<1x8x384xf32>
    %29 = vector.shape_cast %28 : vector<1x8x384xf32> to vector<8x384xf32>
    %c64 = arith.constant 64 : index
    %c0_35 = arith.constant 0 : index
    %30 = vector.load %arg10[%c64, %c0_35] : memref<72x384xf32, #tpu.memory_space<vmem>>, vector<8x384xf32>
    tpu.vector_store %arg10[%c64, %c0_35], %29 {strides = array<i32>} : memref<72x384xf32, #tpu.memory_space<vmem>>, vector<8x384xf32>,
    %c0_36 = arith.constant 0 : index
    %c0_37 = arith.constant 0 : index
    %31 = vector.load %arg10[%c0_36, %c0_37] : memref<72x384xf32, #tpu.memory_space<vmem>>, vector<72x384xf32>
    %cst = arith.constant dense<0.000000e+00> : vector<32x384xf32>
    %32 = tpu.matmul %3, %31, %cst {dimension_numbers = #tpu.dot_dimension_numbers<[1], [0], [0], [1], [0, 0, 1, 1], [], []>} : vector<32x72xf32>, vector<72x384xf32>, vector<32x384xf32> -> vector<32x384xf32>
    %c0_38 = arith.constant 0 : index
    %c0_39 = arith.constant 0 : index
    %33 = vector.load %arg3[%c0_38, %c0_39] : memref<32x1xf32, #tpu.memory_space<vmem>>, vector<32x1xf32>
    %34 = vector.broadcast %33 : vector<32x1xf32> to vector<32x384xf32>
    %35 = arith.addf %32, %34 : vector<32x384xf32>
    %36 = vector.broadcast %0 : vector<1x384xf32> to vector<32x384xf32>
    %37 = arith.mulf %35, %36 : vector<32x384xf32>
    %cst_40 = arith.constant dense<0.000000e+00> : vector<32xf32>
    %38 = vector.multi_reduction <add>, %37, %cst_40 [1] : vector<32x384xf32> to vector<32xf32>
    %39 = vector.shape_cast %38 : vector<32xf32> to vector<32x1xf32>
    %40 = vector.shape_cast %39 : vector<32x1xf32> to vector<32x1xf32>
    %41 = vector.broadcast %40 : vector<32x1xf32> to vector<32x128xf32>
    %cst_41 = arith.constant dense<0.000000e+00> : vector<16x128xf32>
    %42 = tpu.matmul %1, %41, %cst_41 {dimension_numbers = #tpu.dot_dimension_numbers<[1], [0], [0], [1], [0, 0, 1, 1], [], []>} : vector<16x32xf32>, vector<32x128xf32>, vector<16x128xf32> -> vector<16x128xf32>
    %cst_42 = arith.constant dense<0.000000e+00> : vector<32x128xf32>
    %43 = tpu.matmul %2, %42, %cst_42 {dimension_numbers = #tpu.dot_dimension_numbers<[1], [0], [0], [1], [0, 0, 1, 1], [], []>} : vector<32x16xf32>, vector<16x128xf32>, vector<32x128xf32> -> vector<32x128xf32>
    %44 = vector.extract_strided_slice %43 {offsets = [0, 0], sizes = [32, 1], strides = [1, 1]} : vector<32x128xf32> to vector<32x1xf32>
    %cst_43 = arith.constant 0.001953125 : f32
    %45 = vector.broadcast %cst_43 : f32 to vector<32x1xf32>
    %46 = arith.mulf %44, %45 : vector<32x1xf32>
    %47 = vector.broadcast %46 : vector<32x1xf32> to vector<32x384xf32>
    %48 = arith.subf %35, %47 : vector<32x384xf32>
    %49 = arith.mulf %48, %48 : vector<32x384xf32>
    %50 = vector.broadcast %0 : vector<1x384xf32> to vector<32x384xf32>
    %51 = arith.mulf %49, %50 : vector<32x384xf32>
    %cst_44 = arith.constant dense<0.000000e+00> : vector<32xf32>
    %52 = vector.multi_reduction <add>, %51, %cst_44 [1] : vector<32x384xf32> to vector<32xf32>
    %53 = vector.shape_cast %52 : vector<32xf32> to vector<32x1xf32>
    %54 = vector.shape_cast %53 : vector<32x1xf32> to vector<32x1xf32>
    %55 = vector.broadcast %54 : vector<32x1xf32> to vector<32x128xf32>
    %cst_45 = arith.constant dense<0.000000e+00> : vector<16x128xf32>
    %56 = tpu.matmul %1, %55, %cst_45 {dimension_numbers = #tpu.dot_dimension_numbers<[1], [0], [0], [1], [0, 0, 1, 1], [], []>} : vector<16x32xf32>, vector<32x128xf32>, vector<16x128xf32> -> vector<16x128xf32>
    %cst_46 = arith.constant dense<0.000000e+00> : vector<32x128xf32>
    %57 = tpu.matmul %2, %56, %cst_46 {dimension_numbers = #tpu.dot_dimension_numbers<[1], [0], [0], [1], [0, 0, 1, 1], [], []>} : vector<32x16xf32>, vector<16x128xf32>, vector<32x128xf32> -> vector<32x128xf32>
    %58 = vector.extract_strided_slice %57 {offsets = [0, 0], sizes = [32, 1], strides = [1, 1]} : vector<32x128xf32> to vector<32x1xf32>
    %cst_47 = arith.constant 0.001953125 : f32
    %59 = vector.broadcast %cst_47 : f32 to vector<32x1xf32>
    %60 = arith.mulf %58, %59 : vector<32x1xf32>
    %cst_48 = arith.constant 9.99999974E-6 : f32
    %61 = vector.broadcast %cst_48 : f32 to vector<32x1xf32>
    %62 = arith.addf %60, %61 : vector<32x1xf32>
    %63 = math.rsqrt %62 : vector<32x1xf32>
    %c0_49 = arith.constant 0 : index
    %c0_50 = arith.constant 0 : index
    %64 = vector.load %arg4[%c0_49, %c0_50] : memref<32x1xf32, #tpu.memory_space<vmem>>, vector<32x1xf32>
    %65 = arith.mulf %63, %64 : vector<32x1xf32>
    %66 = vector.broadcast %65 : vector<32x1xf32> to vector<32x384xf32>
    %67 = arith.mulf %48, %66 : vector<32x384xf32>
    %c0_51 = arith.constant 0 : index
    %c0_52 = arith.constant 0 : index
    %68 = vector.load %arg5[%c0_51, %c0_52] : memref<32x1xf32, #tpu.memory_space<vmem>>, vector<32x1xf32>
    %69 = vector.broadcast %68 : vector<32x1xf32> to vector<32x384xf32>
    %70 = arith.addf %67, %69 : vector<32x384xf32>
    %c0_53 = arith.constant 0 : index
    %c0_54 = arith.constant 0 : index
    %c0_55 = arith.constant 0 : index
    %71 = vector.load %arg9[%c0_53, %c0_54, %c0_55] : memref<2x32x384xf32, #tpu.memory_space<vmem>>, vector<1x32x384xf32>
    %72 = vector.shape_cast %71 : vector<1x32x384xf32> to vector<32x384xf32>
    %73 = vector.shape_cast %70 : vector<32x384xf32> to vector<1x32x384xf32>
    tpu.vector_store %arg9[%c0_53, %c0_54, %c0_55], %73 {strides = array<i32>} : memref<2x32x384xf32, #tpu.memory_space<vmem>>, vector<1x32x384xf32>,
    %c1_56 = arith.constant 1 : index
    %c0_57 = arith.constant 0 : index
    %c0_58 = arith.constant 0 : index
    %74 = vector.load %arg1[%c1_56, %c0_57, %c0_58] : memref<2x8x432xf32, #tpu.memory_space<vmem>>, vector<1x8x384xf32>
    %75 = vector.shape_cast %74 : vector<1x8x384xf32> to vector<8x384xf32>
    %c0_59 = arith.constant 0 : index
    %c0_60 = arith.constant 0 : index
    %76 = vector.load %arg10[%c0_59, %c0_60] : memref<72x384xf32, #tpu.memory_space<vmem>>, vector<8x384xf32>
    tpu.vector_store %arg10[%c0_59, %c0_60], %75 {strides = array<i32>} : memref<72x384xf32, #tpu.memory_space<vmem>>, vector<8x384xf32>,
    %c1_61 = arith.constant 1 : index
    %c0_62 = arith.constant 0 : index
    %c1_63 = arith.constant 1 : index
    %77 = vector.load %arg1[%c1_61, %c0_62, %c1_63] : memref<2x8x432xf32, #tpu.memory_space<vmem>>, vector<1x8x384xf32>
    %78 = vector.shape_cast %77 : vector<1x8x384xf32> to vector<8x384xf32>
    %c8_64 = arith.constant 8 : index
    %c0_65 = arith.constant 0 : index
    %79 = vector.load %arg10[%c8_64, %c0_65] : memref<72x384xf32, #tpu.memory_space<vmem>>, vector<8x384xf32>
    tpu.vector_store %arg10[%c8_64, %c0_65], %78 {strides = array<i32>} : memref<72x384xf32, #tpu.memory_space<vmem>>, vector<8x384xf32>,
    %c1_66 = arith.constant 1 : index
    %c0_67 = arith.constant 0 : index
    %c2_68 = arith.constant 2 : index
    %80 = vector.load %arg1[%c1_66, %c0_67, %c2_68] : memref<2x8x432xf32, #tpu.memory_space<vmem>>, vector<1x8x384xf32>
    %81 = vector.shape_cast %80 : vector<1x8x384xf32> to vector<8x384xf32>
    %c16_69 = arith.constant 16 : index
    %c0_70 = arith.constant 0 : index
    %82 = vector.load %arg10[%c16_69, %c0_70] : memref<72x384xf32, #tpu.memory_space<vmem>>, vector<8x384xf32>
    tpu.vector_store %arg10[%c16_69, %c0_70], %81 {strides = array<i32>} : memref<72x384xf32, #tpu.memory_space<vmem>>, vector<8x384xf32>,
    %c1_71 = arith.constant 1 : index
    %c0_72 = arith.constant 0 : index
    %c18_73 = arith.constant 18 : index
    %83 = vector.load %arg1[%c1_71, %c0_72, %c18_73] : memref<2x8x432xf32, #tpu.memory_space<vmem>>, vector<1x8x384xf32>
    %84 = vector.shape_cast %83 : vector<1x8x384xf32> to vector<8x384xf32>
    %c24_74 = arith.constant 24 : index
    %c0_75 = arith.constant 0 : index
    %85 = vector.load %arg10[%c24_74, %c0_75] : memref<72x384xf32, #tpu.memory_space<vmem>>, vector<8x384xf32>
    tpu.vector_store %arg10[%c24_74, %c0_75], %84 {strides = array<i32>} : memref<72x384xf32, #tpu.memory_space<vmem>>, vector<8x384xf32>,
    %c1_76 = arith.constant 1 : index
    %c0_77 = arith.constant 0 : index
    %c19_78 = arith.constant 19 : index
    %86 = vector.load %arg1[%c1_76, %c0_77, %c19_78] : memref<2x8x432xf32, #tpu.memory_space<vmem>>, vector<1x8x384xf32>
    %87 = vector.shape_cast %86 : vector<1x8x384xf32> to vector<8x384xf32>
    %c32_79 = arith.constant 32 : index
    %c0_80 = arith.constant 0 : index
    %88 = vector.load %arg10[%c32_79, %c0_80] : memref<72x384xf32, #tpu.memory_space<vmem>>, vector<8x384xf32>
    tpu.vector_store %arg10[%c32_79, %c0_80], %87 {strides = array<i32>} : memref<72x384xf32, #tpu.memory_space<vmem>>, vector<8x384xf32>,
    %c1_81 = arith.constant 1 : index
    %c0_82 = arith.constant 0 : index
    %c20_83 = arith.constant 20 : index
    %89 = vector.load %arg1[%c1_81, %c0_82, %c20_83] : memref<2x8x432xf32, #tpu.memory_space<vmem>>, vector<1x8x384xf32>
    %90 = vector.shape_cast %89 : vector<1x8x384xf32> to vector<8x384xf32>
    %c40_84 = arith.constant 40 : index
    %c0_85 = arith.constant 0 : index
    %91 = vector.load %arg10[%c40_84, %c0_85] : memref<72x384xf32, #tpu.memory_space<vmem>>, vector<8x384xf32>
    tpu.vector_store %arg10[%c40_84, %c0_85], %90 {strides = array<i32>} : memref<72x384xf32, #tpu.memory_space<vmem>>, vector<8x384xf32>,
    %c1_86 = arith.constant 1 : index
    %c0_87 = arith.constant 0 : index
    %c36_88 = arith.constant 36 : index
    %92 = vector.load %arg1[%c1_86, %c0_87, %c36_88] : memref<2x8x432xf32, #tpu.memory_space<vmem>>, vector<1x8x384xf32>
    %93 = vector.shape_cast %92 : vector<1x8x384xf32> to vector<8x384xf32>
    %c48_89 = arith.constant 48 : index
    %c0_90 = arith.constant 0 : index
    %94 = vector.load %arg10[%c48_89, %c0_90] : memref<72x384xf32, #tpu.memory_space<vmem>>, vector<8x384xf32>
    tpu.vector_store %arg10[%c48_89, %c0_90], %93 {strides = array<i32>} : memref<72x384xf32, #tpu.memory_space<vmem>>, vector<8x384xf32>,
    %c1_91 = arith.constant 1 : index
    %c0_92 = arith.constant 0 : index
    %c37_93 = arith.constant 37 : index
    %95 = vector.load %arg1[%c1_91, %c0_92, %c37_93] : memref<2x8x432xf32, #tpu.memory_space<vmem>>, vector<1x8x384xf32>
    %96 = vector.shape_cast %95 : vector<1x8x384xf32> to vector<8x384xf32>
    %c56_94 = arith.constant 56 : index
    %c0_95 = arith.constant 0 : index
    %97 = vector.load %arg10[%c56_94, %c0_95] : memref<72x384xf32, #tpu.memory_space<vmem>>, vector<8x384xf32>
    tpu.vector_store %arg10[%c56_94, %c0_95], %96 {strides = array<i32>} : memref<72x384xf32, #tpu.memory_space<vmem>>, vector<8x384xf32>,
    %c1_96 = arith.constant 1 : index
    %c0_97 = arith.constant 0 : index
    %c38_98 = arith.constant 38 : index
    %98 = vector.load %arg1[%c1_96, %c0_97, %c38_98] : memref<2x8x432xf32, #tpu.memory_space<vmem>>, vector<1x8x384xf32>
    %99 = vector.shape_cast %98 : vector<1x8x384xf32> to vector<8x384xf32>
    %c64_99 = arith.constant 64 : index
    %c0_100 = arith.constant 0 : index
    %100 = vector.load %arg10[%c64_99, %c0_100] : memref<72x384xf32, #tpu.memory_space<vmem>>, vector<8x384xf32>
    tpu.vector_store %arg10[%c64_99, %c0_100], %99 {strides = array<i32>} : memref<72x384xf32, #tpu.memory_space<vmem>>, vector<8x384xf32>,
    %c0_101 = arith.constant 0 : index
    %c0_102 = arith.constant 0 : index
    %101 = vector.load %arg10[%c0_101, %c0_102] : memref<72x384xf32, #tpu.memory_space<vmem>>, vector<72x384xf32>
    %cst_103 = arith.constant dense<0.000000e+00> : vector<32x384xf32>
    %102 = tpu.matmul %3, %101, %cst_103 {dimension_numbers = #tpu.dot_dimension_numbers<[1], [0], [0], [1], [0, 0, 1, 1], [], []>} : vector<32x72xf32>, vector<72x384xf32>, vector<32x384xf32> -> vector<32x384xf32>
    %c0_104 = arith.constant 0 : index
    %c0_105 = arith.constant 0 : index
    %103 = vector.load %arg3[%c0_104, %c0_105] : memref<32x1xf32, #tpu.memory_space<vmem>>, vector<32x1xf32>
    %104 = vector.broadcast %103 : vector<32x1xf32> to vector<32x384xf32>
    %105 = arith.addf %102, %104 : vector<32x384xf32>
    %106 = vector.broadcast %0 : vector<1x384xf32> to vector<32x384xf32>
    %107 = arith.mulf %105, %106 : vector<32x384xf32>
    %cst_106 = arith.constant dense<0.000000e+00> : vector<32xf32>
    %108 = vector.multi_reduction <add>, %107, %cst_106 [1] : vector<32x384xf32> to vector<32xf32>
    %109 = vector.shape_cast %108 : vector<32xf32> to vector<32x1xf32>
    %110 = vector.shape_cast %109 : vector<32x1xf32> to vector<32x1xf32>
    %111 = vector.broadcast %110 : vector<32x1xf32> to vector<32x128xf32>
    %cst_107 = arith.constant dense<0.000000e+00> : vector<16x128xf32>
    %112 = tpu.matmul %1, %111, %cst_107 {dimension_numbers = #tpu.dot_dimension_numbers<[1], [0], [0], [1], [0, 0, 1, 1], [], []>} : vector<16x32xf32>, vector<32x128xf32>, vector<16x128xf32> -> vector<16x128xf32>
    %cst_108 = arith.constant dense<0.000000e+00> : vector<32x128xf32>
    %113 = tpu.matmul %2, %112, %cst_108 {dimension_numbers = #tpu.dot_dimension_numbers<[1], [0], [0], [1], [0, 0, 1, 1], [], []>} : vector<32x16xf32>, vector<16x128xf32>, vector<32x128xf32> -> vector<32x128xf32>
    %114 = vector.extract_strided_slice %113 {offsets = [0, 0], sizes = [32, 1], strides = [1, 1]} : vector<32x128xf32> to vector<32x1xf32>
    %cst_109 = arith.constant 0.001953125 : f32
    %115 = vector.broadcast %cst_109 : f32 to vector<32x1xf32>
    %116 = arith.mulf %114, %115 : vector<32x1xf32>
    %117 = vector.broadcast %116 : vector<32x1xf32> to vector<32x384xf32>
    %118 = arith.subf %105, %117 : vector<32x384xf32>
    %119 = arith.mulf %118, %118 : vector<32x384xf32>
    %120 = vector.broadcast %0 : vector<1x384xf32> to vector<32x384xf32>
    %121 = arith.mulf %119, %120 : vector<32x384xf32>
    %cst_110 = arith.constant dense<0.000000e+00> : vector<32xf32>
    %122 = vector.multi_reduction <add>, %121, %cst_110 [1] : vector<32x384xf32> to vector<32xf32>
    %123 = vector.shape_cast %122 : vector<32xf32> to vector<32x1xf32>
    %124 = vector.shape_cast %123 : vector<32x1xf32> to vector<32x1xf32>
    %125 = vector.broadcast %124 : vector<32x1xf32> to vector<32x128xf32>
    %cst_111 = arith.constant dense<0.000000e+00> : vector<16x128xf32>
    %126 = tpu.matmul %1, %125, %cst_111 {dimension_numbers = #tpu.dot_dimension_numbers<[1], [0], [0], [1], [0, 0, 1, 1], [], []>} : vector<16x32xf32>, vector<32x128xf32>, vector<16x128xf32> -> vector<16x128xf32>
    %cst_112 = arith.constant dense<0.000000e+00> : vector<32x128xf32>
    %127 = tpu.matmul %2, %126, %cst_112 {dimension_numbers = #tpu.dot_dimension_numbers<[1], [0], [0], [1], [0, 0, 1, 1], [], []>} : vector<32x16xf32>, vector<16x128xf32>, vector<32x128xf32> -> vector<32x128xf32>
    %128 = vector.extract_strided_slice %127 {offsets = [0, 0], sizes = [32, 1], strides = [1, 1]} : vector<32x128xf32> to vector<32x1xf32>
    %cst_113 = arith.constant 0.001953125 : f32
    %129 = vector.broadcast %cst_113 : f32 to vector<32x1xf32>
    %130 = arith.mulf %128, %129 : vector<32x1xf32>
    %cst_114 = arith.constant 9.99999974E-6 : f32
    %131 = vector.broadcast %cst_114 : f32 to vector<32x1xf32>
    %132 = arith.addf %130, %131 : vector<32x1xf32>
    %133 = math.rsqrt %132 : vector<32x1xf32>
    %c0_115 = arith.constant 0 : index
    %c0_116 = arith.constant 0 : index
    %134 = vector.load %arg4[%c0_115, %c0_116] : memref<32x1xf32, #tpu.memory_space<vmem>>, vector<32x1xf32>
    %135 = arith.mulf %133, %134 : vector<32x1xf32>
    %136 = vector.broadcast %135 : vector<32x1xf32> to vector<32x384xf32>
    %137 = arith.mulf %118, %136 : vector<32x384xf32>
    %c0_117 = arith.constant 0 : index
    %c0_118 = arith.constant 0 : index
    %138 = vector.load %arg5[%c0_117, %c0_118] : memref<32x1xf32, #tpu.memory_space<vmem>>, vector<32x1xf32>
    %139 = vector.broadcast %138 : vector<32x1xf32> to vector<32x384xf32>
    %140 = arith.addf %137, %139 : vector<32x384xf32>
    %c1_119 = arith.constant 1 : index
    %c0_120 = arith.constant 0 : index
    %c0_121 = arith.constant 0 : index
    %141 = vector.load %arg9[%c1_119, %c0_120, %c0_121] : memref<2x32x384xf32, #tpu.memory_space<vmem>>, vector<1x32x384xf32>
    %142 = vector.shape_cast %141 : vector<1x32x384xf32> to vector<32x384xf32>
    %143 = vector.shape_cast %140 : vector<32x384xf32> to vector<1x32x384xf32>
    tpu.vector_store %arg9[%c1_119, %c0_120, %c0_121], %143 {strides = array<i32>} : memref<2x32x384xf32, #tpu.memory_space<vmem>>, vector<1x32x384xf32>,
    return
  }
  func.func @transform_0(%arg0: i32) -> (i32, i32, i32) {
    %c0_i32 = arith.constant 0 : i32
    %c0_i32_0 = arith.constant 0 : i32
    %c0_i32_1 = arith.constant 0 : i32
    return %arg0, %c0_i32, %c0_i32_0 : i32, i32, i32
  }
  func.func @transform_1(%arg0: i32) -> (i32, i32) {
    %c0_i32 = arith.constant 0 : i32
    %c0_i32_0 = arith.constant 0 : i32
    %c0_i32_1 = arith.constant 0 : i32
    return %c0_i32, %c0_i32_0 : i32, i32
  }
  func.func @transform_2(%arg0: i32) -> (i32, i32) {
    %c0_i32 = arith.constant 0 : i32
    %c0_i32_0 = arith.constant 0 : i32
    %c0_i32_1 = arith.constant 0 : i32
    return %c0_i32, %c0_i32_0 : i32, i32
  }
  func.func @transform_3(%arg0: i32) -> (i32, i32) {
    %c0_i32 = arith.constant 0 : i32
    %c0_i32_0 = arith.constant 0 : i32
    %c0_i32_1 = arith.constant 0 : i32
    return %c0_i32, %c0_i32_0 : i32, i32
  }
  func.func @transform_4(%arg0: i32) -> (i32, i32) {
    %c0_i32 = arith.constant 0 : i32
    %c0_i32_0 = arith.constant 0 : i32
    %c0_i32_1 = arith.constant 0 : i32
    return %c0_i32, %c0_i32_0 : i32, i32
  }
  func.func @transform_5(%arg0: i32) -> (i32, i32) {
    %c0_i32 = arith.constant 0 : i32
    %c0_i32_0 = arith.constant 0 : i32
    %c0_i32_1 = arith.constant 0 : i32
    return %c0_i32, %c0_i32_0 : i32, i32
  }
  func.func @transform_6(%arg0: i32) -> (i32, i32) {
    %c0_i32 = arith.constant 0 : i32
    %c0_i32_0 = arith.constant 0 : i32
    %c0_i32_1 = arith.constant 0 : i32
    return %c0_i32, %c0_i32_0 : i32, i32
  }
  func.func @transform_7(%arg0: i32) -> (i32, i32) {
    %c0_i32 = arith.constant 0 : i32
    %c0_i32_0 = arith.constant 0 : i32
    %c0_i32_1 = arith.constant 0 : i32
    return %c0_i32, %c0_i32_0 : i32, i32
  }
  func.func @transform_8(%arg0: i32) -> (i32, i32, i32) {
    %c0_i32 = arith.constant 0 : i32
    %c0_i32_0 = arith.constant 0 : i32
    %c0_i32_1 = arith.constant 0 : i32
    return %arg0, %c0_i32, %c0_i32_0 : i32, i32, i32
  }
}

</mosaic_0001>

<llo_original>
// kernel: conv2d_groupnorm.1
$region0: #{conv2d_groupnorm.1}
  #allocation0 [shape = 'u32[]', space=smem, size = 0x4, offset = 0x4, fixed_abs, tag = 'smem constant byte address 0x4 - core index']
  #allocation1 [shape = 'u32[144,128]{1,0:T(1,128)}', space=vmem, size = 0x12000, scoped, tag = 'internal scratch']
  #allocation2 [shape = 'f32[72,384]{1,0:T(8,128)}', space=vmem, size = 0x1b000, scoped, tag = 'scratch operand']
  %s0 = inlined_call_operand.vmem [shape: f32[2,8,432], index: 0, kind: input, shape index: {}]
  %s1 = inlined_call_operand.vmem [shape: f32[32,72], index: 1, kind: input, shape index: {}]
  %s2 = inlined_call_operand.vmem [shape: f32[32,1], index: 2, kind: input, shape index: {}]
  %s3 = inlined_call_operand.vmem [shape: f32[32,1], index: 3, kind: input, shape index: {}]
  %s4 = inlined_call_operand.vmem [shape: f32[32,1], index: 4, kind: input, shape index: {}]
  %s5 = inlined_call_operand.vmem [shape: f32[1,384], index: 5, kind: input, shape index: {}]
  %s6 = inlined_call_operand.vmem [shape: f32[16,32], index: 6, kind: input, shape index: {}]
  %s7 = inlined_call_operand.vmem [shape: f32[32,16], index: 7, kind: input, shape index: {}]
  %s8 = inlined_call_operand.vmem [shape: f32[2,32,384], index: 8, kind: output, shape index: {}]
  %s9 = sld [smem:[#allocation0]]
  $region42: #{conv2d_groupnorm.1} parent=0
    _
  %s11 = ssub.s32 1, %s9
  %s12 = scalar_select 0, %s11, %s9
  // Predicated region
  $region2: #{conv2d_groupnorm.1} parent=0 // pred_check
    _
  $region3: #{conv2d_groupnorm.1} parent=0 // pred_check_branch
    %14 = sbr.rel (0) target = $region5
  $region4: #{conv2d_groupnorm.1} parent=0 // pred_region
    _
  $region5: #{conv2d_groupnorm.1} parent=0 // pred_fallthru
    _
  // Predicated region
  $region6: #{conv2d_groupnorm.1} parent=0 // pred_check
    _
  $region7: #{conv2d_groupnorm.1} parent=0 // pred_check_branch
    %16 = sbr.rel (0) target = $region9
  $region8: #{conv2d_groupnorm.1} parent=0 // pred_region
    _
  $region9: #{conv2d_groupnorm.1} parent=0 // pred_fallthru
    _
  // Predicated region
  $region10: #{conv2d_groupnorm.1} parent=0 // pred_check
    _
  $region11: #{conv2d_groupnorm.1} parent=0 // pred_check_branch
    %18 = sbr.rel (0) target = $region13
  $region12: #{conv2d_groupnorm.1} parent=0 // pred_region
    _
  $region13: #{conv2d_groupnorm.1} parent=0 // pred_fallthru
    _
  // Predicated region
  $region14: #{conv2d_groupnorm.1} parent=0 // pred_check
    _
  $region15: #{conv2d_groupnorm.1} parent=0 // pred_check_branch
    %20 = sbr.rel (0) target = $region17
  $region16: #{conv2d_groupnorm.1} parent=0 // pred_region
    _
  $region17: #{conv2d_groupnorm.1} parent=0 // pred_fallthru
    _
  // Predicated region
  $region18: #{conv2d_groupnorm.1} parent=0 // pred_check
    _
  $region19: #{conv2d_groupnorm.1} parent=0 // pred_check_branch
    %22 = sbr.rel (0) target = $region21
  $region20: #{conv2d_groupnorm.1} parent=0 // pred_region
    _
  $region21: #{conv2d_groupnorm.1} parent=0 // pred_fallthru
    _
  // Predicated region
  $region22: #{conv2d_groupnorm.1} parent=0 // pred_check
    _
  $region23: #{conv2d_groupnorm.1} parent=0 // pred_check_branch
    %24 = sbr.rel (0) target = $region25
  $region24: #{conv2d_groupnorm.1} parent=0 // pred_region
    _
  $region25: #{conv2d_groupnorm.1} parent=0 // pred_fallthru
    _
  // Predicated region
  $region26: #{conv2d_groupnorm.1} parent=0 // pred_check
    _
  $region27: #{conv2d_groupnorm.1} parent=0 // pred_check_branch
    %26 = sbr.rel (0) target = $region29
  $region28: #{conv2d_groupnorm.1} parent=0 // pred_region
    _
  $region29: #{conv2d_groupnorm.1} parent=0 // pred_fallthru
    _
  // Predicated region
  $region30: #{conv2d_groupnorm.1} parent=0 // pred_check
    _
  $region31: #{conv2d_groupnorm.1} parent=0 // pred_check_branch
    %28 = sbr.rel (0) target = $region33
  $region32: #{conv2d_groupnorm.1} parent=0 // pred_region
    _
  $region33: #{conv2d_groupnorm.1} parent=0 // pred_fallthru
    _
  %v29 = vld [vmem:[%s5] sm:$0x7]
  %v30 = vld [vmem:[%s6] sm:$0xff]
  %v31 = vld [vmem:[%s6 + $0x8] sm:$0xff]
  %v32 = vld [vmem:[%s7] sm:$0xff]
  %v33 = vld [vmem:[%s7 + $0x8] sm:$0xff]
  %v34 = vld [vmem:[%s7 + $0x10] sm:$0xff]
  %v35 = vld [vmem:[%s7 + $0x18] sm:$0xff]
  %v36 = vld [vmem:[%s1] sm:$0xff]
  %v37 = vld [vmem:[%s1 + $0x8] sm:$0xff]
  %v38 = vld [vmem:[%s1 + $0x10] sm:$0xff]
  %v39 = vld [vmem:[%s1 + $0x18] sm:$0xff]
  %v40 = vld [vmem:[%s0] sm:$0xff]
  %v41 = vld [vmem:[%s0 + $0x8] sm:$0xff]
  %v42 = vld [vmem:[%s0 + $0x10] sm:$0xff]
  %43 = vst [vmem:[#allocation2] sm:$0xff] %v40
  %44 = vst [vmem:[#allocation2 + $0x8] sm:$0xff] %v41
  %45 = vst [vmem:[#allocation2 + $0x10] sm:$0xff] %v42
  %v46 = vld [vmem:[%s0] sm:$0xff]
  %v47 = vld [vmem:[%s0 + $0x8] sm:$0xff]
  %v48 = vld [vmem:[%s0 + $0x10] sm:$0xff]
  %v49 = vld [vmem:[%s0 + $0x18] sm:$0xff]
  %54 = vrot.lane.b32.xlu0 %v46, 127
  %v55 = vpop.permute.xlu0 %54
  %56 = vrot.lane.b32.xlu0 %v47, 127
  %v57 = vpop.permute.xlu0 %56
  %58 = vrot.lane.b32.xlu0 %v48, 127
  %v59 = vpop.permute.xlu0 %58
  %60 = vrot.lane.b32.xlu0 %v49, 127
  %v61 = vpop.permute.xlu0 %60
  %vm62 = vcmask 1039360
  %v63 = vsel %vm62, %v55, %v57
  %v64 = vsel %vm62, %v57, %v59
  %v65 = vsel %vm62, %v59, %v61
  %69 = vst [vmem:[#allocation2 + $0x18] sm:$0xff] %v63
  %70 = vst [vmem:[#allocation2 + $0x20] sm:$0xff] %v64
  %71 = vst [vmem:[#allocation2 + $0x28] sm:$0xff] %v65
  %v72 = vld [vmem:[%s0] sm:$0xff]
  %v73 = vld [vmem:[%s0 + $0x8] sm:$0xff]
  %v74 = vld [vmem:[%s0 + $0x10] sm:$0xff]
  %v75 = vld [vmem:[%s0 + $0x18] sm:$0xff]
  %80 = vrot.lane.b32.xlu0 %v72, 126
  %v81 = vpop.permute.xlu0 %80
  %82 = vrot.lane.b32.xlu0 %v73, 126
  %v83 = vpop.permute.xlu0 %82
  %84 = vrot.lane.b32.xlu0 %v74, 126
  %v85 = vpop.permute.xlu0 %84
  %86 = vrot.lane.b32.xlu0 %v75, 126
  %v87 = vpop.permute.xlu0 %86
  %vm88 = vcmask 1031168
  %v89 = vsel %vm88, %v81, %v83
  %v90 = vsel %vm88, %v83, %v85
  %v91 = vsel %vm88, %v85, %v87
  %95 = vst [vmem:[#allocation2 + $0x30] sm:$0xff] %v89
  %96 = vst [vmem:[#allocation2 + $0x38] sm:$0xff] %v90
  %97 = vst [vmem:[#allocation2 + $0x40] sm:$0xff] %v91
  %v98 = vld [vmem:[%s0] sm:$0xff]
  %v99 = vld [vmem:[%s0 + $0x8] sm:$0xff]
  %v100 = vld [vmem:[%s0 + $0x10] sm:$0xff]
  %v101 = vld [vmem:[%s0 + $0x18] sm:$0xff]
  %106 = vrot.lane.b32.xlu0 %v98, 110
  %v107 = vpop.permute.xlu0 %106
  %108 = vrot.lane.b32.xlu0 %v99, 110
  %v109 = vpop.permute.xlu0 %108
  %110 = vrot.lane.b32.xlu0 %v100, 110
  %v111 = vpop.permute.xlu0 %110
  %112 = vrot.lane.b32.xlu0 %v101, 110
  %v113 = vpop.permute.xlu0 %112
  %vm114 = vcmask 900096
  %v115 = vsel %vm114, %v107, %v109
  %v116 = vsel %vm114, %v109, %v111
  %v117 = vsel %vm114, %v111, %v113
  %121 = vst [vmem:[#allocation2 + $0x48] sm:$0xff] %v115
  %122 = vst [vmem:[#allocation2 + $0x50] sm:$0xff] %v116
  %123 = vst [vmem:[#allocation2 + $0x58] sm:$0xff] %v117
  %v124 = vld [vmem:[%s0] sm:$0xff]
  %v125 = vld [vmem:[%s0 + $0x8] sm:$0xff]
  %v126 = vld [vmem:[%s0 + $0x10] sm:$0xff]
  %v127 = vld [vmem:[%s0 + $0x18] sm:$0xff]
  %132 = vrot.lane.b32.xlu0 %v124, 109
  %v133 = vpop.permute.xlu0 %132
  %134 = vrot.lane.b32.xlu0 %v125, 109
  %v135 = vpop.permute.xlu0 %134
  %136 = vrot.lane.b32.xlu0 %v126, 109
  %v137 = vpop.permute.xlu0 %136
  %138 = vrot.lane.b32.xlu0 %v127, 109
  %v139 = vpop.permute.xlu0 %138
  %vm140 = vcmask 891904
  %v141 = vsel %vm140, %v133, %v135
  %v142 = vsel %vm140, %v135, %v137
  %v143 = vsel %vm140, %v137, %v139
  %147 = vst [vmem:[#allocation2 + $0x60] sm:$0xff] %v141
  %148 = vst [vmem:[#allocation2 + $0x68] sm:$0xff] %v142
  %149 = vst [vmem:[#allocation2 + $0x70] sm:$0xff] %v143
  %v150 = vld [vmem:[%s0] sm:$0xff]
  %v151 = vld [vmem:[%s0 + $0x8] sm:$0xff]
  %v152 = vld [vmem:[%s0 + $0x10] sm:$0xff]
  %v153 = vld [vmem:[%s0 + $0x18] sm:$0xff]
  %158 = vrot.lane.b32.xlu0 %v150, 108
  %v159 = vpop.permute.xlu0 %158
  %160 = vrot.lane.b32.xlu0 %v151, 108
  %v161 = vpop.permute.xlu0 %160
  %162 = vrot.lane.b32.xlu0 %v152, 108
  %v163 = vpop.permute.xlu0 %162
  %164 = vrot.lane.b32.xlu0 %v153, 108
  %v165 = vpop.permute.xlu0 %164
  %vm166 = vcmask 883712
  %v167 = vsel %vm166, %v159, %v161
  %v168 = vsel %vm166, %v161, %v163
  %v169 = vsel %vm166, %v163, %v165
  %173 = vst [vmem:[#allocation2 + $0x78] sm:$0xff] %v167
  %174 = vst [vmem:[#allocation2 + $0x80] sm:$0xff] %v168
  %175 = vst [vmem:[#allocation2 + $0x88] sm:$0xff] %v169
  %v176 = vld [vmem:[%s0] sm:$0xff]
  %v177 = vld [vmem:[%s0 + $0x8] sm:$0xff]
  %v178 = vld [vmem:[%s0 + $0x10] sm:$0xff]
  %v179 = vld [vmem:[%s0 + $0x18] sm:$0xff]
  %184 = vrot.lane.b32.xlu0 %v176, 92
  %v185 = vpop.permute.xlu0 %184
  %186 = vrot.lane.b32.xlu0 %v177, 92
  %v187 = vpop.permute.xlu0 %186
  %188 = vrot.lane.b32.xlu0 %v178, 92
  %v189 = vpop.permute.xlu0 %188
  %190 = vrot.lane.b32.xlu0 %v179, 92
  %v191 = vpop.permute.xlu0 %190
  %vm192 = vcmask 752640
  %v193 = vsel %vm192, %v185, %v187
  %v194 = vsel %vm192, %v187, %v189
  %v195 = vsel %vm192, %v189, %v191
  %199 = vst [vmem:[#allocation2 + $0x90] sm:$0xff] %v193
  %200 = vst [vmem:[#allocation2 + $0x98] sm:$0xff] %v194
  %201 = vst [vmem:[#allocation2 + $0xa0] sm:$0xff] %v195
  %v202 = vld [vmem:[%s0] sm:$0xff]
  %v203 = vld [vmem:[%s0 + $0x8] sm:$0xff]
  %v204 = vld [vmem:[%s0 + $0x10] sm:$0xff]
  %v205 = vld [vmem:[%s0 + $0x18] sm:$0xff]
  %210 = vrot.lane.b32.xlu0 %v202, 91
  %v211 = vpop.permute.xlu0 %210
  %212 = vrot.lane.b32.xlu0 %v203, 91
  %v213 = vpop.permute.xlu0 %212
  %214 = vrot.lane.b32.xlu0 %v204, 91
  %v215 = vpop.permute.xlu0 %214
  %216 = vrot.lane.b32.xlu0 %v205, 91
  %v217 = vpop.permute.xlu0 %216
  %vm218 = vcmask 744448
  %v219 = vsel %vm218, %v211, %v213
  %v220 = vsel %vm218, %v213, %v215
  %v221 = vsel %vm218, %v215, %v217
  %225 = vst [vmem:[#allocation2 + $0xa8] sm:$0xff] %v219
  %226 = vst [vmem:[#allocation2 + $0xb0] sm:$0xff] %v220
  %227 = vst [vmem:[#allocation2 + $0xb8] sm:$0xff] %v221
  %v228 = vld [vmem:[%s0] sm:$0xff]
  %v229 = vld [vmem:[%s0 + $0x8] sm:$0xff]
  %v230 = vld [vmem:[%s0 + $0x10] sm:$0xff]
  %v231 = vld [vmem:[%s0 + $0x18] sm:$0xff]
  %236 = vrot.lane.b32.xlu0 %v228, 90
  %v237 = vpop.permute.xlu0 %236
  %238 = vrot.lane.b32.xlu0 %v229, 90
  %v239 = vpop.permute.xlu0 %238
  %240 = vrot.lane.b32.xlu0 %v230, 90
  %v241 = vpop.permute.xlu0 %240
  %242 = vrot.lane.b32.xlu0 %v231, 90
  %v243 = vpop.permute.xlu0 %242
  %vm244 = vcmask 736256
  %v245 = vsel %vm244, %v237, %v239
  %v246 = vsel %vm244, %v239, %v241
  %v247 = vsel %vm244, %v241, %v243
  %251 = vst [vmem:[#allocation2 + $0xc0] sm:$0xff] %v245
  %252 = vst [vmem:[#allocation2 + $0xc8] sm:$0xff] %v246
  %253 = vst [vmem:[#allocation2 + $0xd0] sm:$0xff] %v247
  %v254 = vld [vmem:[#allocation2] sm:$0xff]
  %v255 = vld [vmem:[#allocation2 + $0x8] sm:$0xff]
  %v256 = vld [vmem:[#allocation2 + $0x10] sm:$0xff]
  %v257 = vld [vmem:[#allocation2 + $0x18] sm:$0xff]
  %v258 = vld [vmem:[#allocation2 + $0x20] sm:$0xff]
  %v259 = vld [vmem:[#allocation2 + $0x28] sm:$0xff]
  %v260 = vld [vmem:[#allocation2 + $0x30] sm:$0xff]
  %v261 = vld [vmem:[#allocation2 + $0x38] sm:$0xff]
  %v262 = vld [vmem:[#allocation2 + $0x40] sm:$0xff]
  %v263 = vld [vmem:[#allocation2 + $0x48] sm:$0xff]
  %v264 = vld [vmem:[#allocation2 + $0x50] sm:$0xff]
  %v265 = vld [vmem:[#allocation2 + $0x58] sm:$0xff]
  %v266 = vld [vmem:[#allocation2 + $0x60] sm:$0xff]
  %v267 = vld [vmem:[#allocation2 + $0x68] sm:$0xff]
  %v268 = vld [vmem:[#allocation2 + $0x70] sm:$0xff]
  %v269 = vld [vmem:[#allocation2 + $0x78] sm:$0xff]
  %v270 = vld [vmem:[#allocation2 + $0x80] sm:$0xff]
  %v271 = vld [vmem:[#allocation2 + $0x88] sm:$0xff]
  %v272 = vld [vmem:[#allocation2 + $0x90] sm:$0xff]
  %v273 = vld [vmem:[#allocation2 + $0x98] sm:$0xff]
  %v274 = vld [vmem:[#allocation2 + $0xa0] sm:$0xff]
  %v275 = vld [vmem:[#allocation2 + $0xa8] sm:$0xff]
  %v276 = vld [vmem:[#allocation2 + $0xb0] sm:$0xff]
  %v277 = vld [vmem:[#allocation2 + $0xb8] sm:$0xff]
  %v278 = vld [vmem:[#allocation2 + $0xc0] sm:$0xff]
  %v279 = vld [vmem:[#allocation2 + $0xc8] sm:$0xff]
  %v280 = vld [vmem:[#allocation2 + $0xd0] sm:$0xff]
  %v281 = vld [vmem:[%s2] sm:$0xff]
  %v282 = vld [vmem:[%s2 + $0x8] sm:$0xff]
  %v283 = vld [vmem:[%s2 + $0x10] sm:$0xff]
  %v284 = vld [vmem:[%s2 + $0x18] sm:$0xff]
  %286 = vset.pattern.permute.xlu0 0
  %287 = vperm.xlu0 %286, %v281
  %v288 = vpop.permute.xlu0 %287
  %291 = vset.pattern.permute.xlu0 0
  %292 = vperm.xlu0 %291, %v282
  %v293 = vpop.permute.xlu0 %292
  %296 = vset.pattern.permute.xlu0 0
  %297 = vperm.xlu0 %296, %v283
  %v298 = vpop.permute.xlu0 %297
  %301 = vset.pattern.permute.xlu0 0
  %302 = vperm.xlu0 %301, %v284
  %v303 = vpop.permute.xlu0 %302
  %vm305 = vcmask 588800
  %v307 = vsel %vm305, %v36, 0
  %v310 = vsel %vm305, %v37, 0
  %v313 = vsel %vm305, %v38, 0
  %v316 = vsel %vm305, %v39, 0
  %318 = vmatprep.subr.mxu0 %v255
  %319 = vmatpush1.msra.mxu0 %v254
  %320 = vmatprep.subr.mxu0 %v258
  %321 = vmatpush1.msra.mxu0 %v257
  %322 = vmatprep.subr.mxu0 %v261
  %323 = vmatpush1.msra.mxu0 %v260
  %324 = vmatprep.subr.mxu0 %v264
  %325 = vmatpush1.msra.mxu0 %v263
  %326 = vmatprep.subr.mxu0 %v267
  %327 = vmatpush1.msra.mxu0 %v266
  %328 = vmatprep.subr.mxu0 %v270
  %329 = vmatpush1.msra.mxu0 %v269
  %330 = vmatprep.subr.mxu0 %v273
  %331 = vmatpush1.msra.mxu0 %v272
  %332 = vmatprep.subr.mxu0 %v276
  %333 = vmatpush1.msra.mxu0 %v275
  %334 = vmatprep.subr.mxu0 %v279
  %335 = vmatpush1.msra.mxu0 %v278
  %336 = vmatprep.subr.mxu0 0.0
  %337 = vmatpush1.msra.mxu0 0.0
  %338 = vmatprep.subr.mxu0 0.0
  %339 = vmatpush1.msra.mxu0 0.0
  %340 = vmatprep.subr.mxu0 0.0
  %341 = vmatpush1.msra.mxu0 0.0
  %342 = vmatprep.subr.mxu0 0.0
  %343 = vmatpush1.msra.mxu0 0.0
  %344 = vmatprep.subr.mxu0 0.0
  %345 = vmatpush1.msra.mxu0 0.0
  %346 = vmatprep.subr.mxu0 0.0
  %347 = vmatpush1.msra.mxu0 0.0
  %348 = vmatprep.subr.mxu0 0.0
  %349 = vmatpush1.msra.mxu0 0.0
  %350 = vmatprep.subr.mxu0 0.0
  %351 = vmatpush1.msra.mxu0 0.0
  %352 = vmatprep.subr.mxu0 0.0
  %353 = vmatpush1.msra.mxu0 0.0
  %354 = vmatprep.subr.mxu0 0.0
  %355 = vmatpush1.msra.mxu0 0.0
  %356 = vmatprep.subr.mxu0 0.0
  %357 = vmatpush1.msra.mxu0 0.0
  %358 = vmatprep.subr.mxu0 0.0
  %359 = vmatpush1.msra.mxu0 0.0
  %360 = vmatprep.subr.mxu0 0.0
  %361 = vmatpush1.msra.mxu0 0.0
  %362 = vmatprep.subr.mxu0 0.0
  %363 = vmatpush1.msra.mxu0 0.0
  %364 = vmatprep.subr.mxu0 0.0
  %365 = vmatpush1.msra.mxu0 0.0
  %366 = vmatprep.subr.mxu0 0.0
  %367 = vmatpush1.msra.mxu0 0.0
  %368 = vmatprep.subr.mxu0 0.0
  %369 = vmatpush1.msra.mxu0 0.0
  %370 = vmatprep.subr.mxu0 0.0
  %371 = vmatpush1.msra.mxu0 0.0
  %372 = vmatprep.subr.mxu0 0.0
  %373 = vmatpush1.msra.mxu0 0.0
  %374 = vmatprep.subr.mxu0 0.0
  %375 = vmatpush1.msra.mxu0 0.0
  %376 = vmatprep.subr.mxu0 0.0
  %377 = vmatpush1.msra.mxu0 0.0
  %378 = vmatprep.subr.mxu0 0.0
  %379 = vmatpush1.msra.mxu0 0.0
  %380 = vmatprep.subr.mxu0 0.0
  %381 = vmatpush1.msra.mxu0 0.0
  %382 = vmatprep.mubr.f32.mxu0 0.0
  %383 = vmatmul.mubr.f32.gmra.mrb[0].mxu0 %v307
  %v384 = vpop.f32.mrb[0].mxu0
  %v385 = vadd.f32 %v288, %v384
  %v386 = vpop.f32.mrb[0].mxu0
  %v387 = vadd.f32 %v288, %v386
  %388 = vmatprep.mubr.f32.mxu0 0.0
  %389 = vmatmul.mubr.f32.gmra.mrb[0].mxu0 %v310
  %v390 = vpop.f32.mrb[0].mxu0
  %v391 = vadd.f32 %v293, %v390
  %v392 = vpop.f32.mrb[0].mxu0
  %v393 = vadd.f32 %v293, %v392
  %394 = vmatprep.mubr.f32.mxu0 0.0
  %395 = vmatmul.mubr.f32.gmra.mrb[0].mxu0 %v313
  %v396 = vpop.f32.mrb[0].mxu0
  %v397 = vadd.f32 %v298, %v396
  %v398 = vpop.f32.mrb[0].mxu0
  %v399 = vadd.f32 %v298, %v398
  %400 = vmatprep.mubr.f32.mxu0 0.0
  %401 = vmatmul.mubr.f32.gmra.mrb[0].mxu0 %v316
  %v402 = vpop.f32.mrb[0].mxu0
  %v403 = vadd.f32 %v303, %v402
  %v404 = vpop.f32.mrb[0].mxu0
  %v405 = vadd.f32 %v303, %v404
  %406 = vdwg.mxu0
  %407 = vmatprep.subr.mxu0 0.0
  %408 = vmatpush1.msra.mxu0 %v256
  %409 = vmatprep.subr.mxu0 0.0
  %410 = vmatpush1.msra.mxu0 %v259
  %411 = vmatprep.subr.mxu0 0.0
  %412 = vmatpush1.msra.mxu0 %v262
  %413 = vmatprep.subr.mxu0 0.0
  %414 = vmatpush1.msra.mxu0 %v265
  %415 = vmatprep.subr.mxu0 0.0
  %416 = vmatpush1.msra.mxu0 %v268
  %417 = vmatprep.subr.mxu0 0.0
  %418 = vmatpush1.msra.mxu0 %v271
  %419 = vmatprep.subr.mxu0 0.0
  %420 = vmatpush1.msra.mxu0 %v274
  %421 = vmatprep.subr.mxu0 0.0
  %422 = vmatpush1.msra.mxu0 %v277
  %423 = vmatprep.subr.mxu0 0.0
  %424 = vmatpush1.msra.mxu0 %v280
  %425 = vmatprep.subr.mxu0 0.0
  %426 = vmatpush1.msra.mxu0 0.0
  %427 = vmatprep.subr.mxu0 0.0
  %428 = vmatpush1.msra.mxu0 0.0
  %429 = vmatprep.subr.mxu0 0.0
  %430 = vmatpush1.msra.mxu0 0.0
  %431 = vmatprep.subr.mxu0 0.0
  %432 = vmatpush1.msra.mxu0 0.0
  %433 = vmatprep.subr.mxu0 0.0
  %434 = vmatpush1.msra.mxu0 0.0
  %435 = vmatprep.subr.mxu0 0.0
  %436 = vmatpush1.msra.mxu0 0.0
  %437 = vmatprep.subr.mxu0 0.0
  %438 = vmatpush1.msra.mxu0 0.0
  %439 = vmatprep.subr.mxu0 0.0
  %440 = vmatpush1.msra.mxu0 0.0
  %441 = vmatprep.subr.mxu0 0.0
  %442 = vmatpush1.msra.mxu0 0.0
  %443 = vmatprep.subr.mxu0 0.0
  %444 = vmatpush1.msra.mxu0 0.0
  %445 = vmatprep.subr.mxu0 0.0
  %446 = vmatpush1.msra.mxu0 0.0
  %447 = vmatprep.subr.mxu0 0.0
  %448 = vmatpush1.msra.mxu0 0.0
  %449 = vmatprep.subr.mxu0 0.0
  %450 = vmatpush1.msra.mxu0 0.0
  %451 = vmatprep.subr.mxu0 0.0
  %452 = vmatpush1.msra.mxu0 0.0
  %453 = vmatprep.subr.mxu0 0.0
  %454 = vmatpush1.msra.mxu0 0.0
  %455 = vmatprep.subr.mxu0 0.0
  %456 = vmatpush1.msra.mxu0 0.0
  %457 = vmatprep.subr.mxu0 0.0
  %458 = vmatpush1.msra.mxu0 0.0
  %459 = vmatprep.subr.mxu0 0.0
  %460 = vmatpush1.msra.mxu0 0.0
  %461 = vmatprep.subr.mxu0 0.0
  %462 = vmatpush1.msra.mxu0 0.0
  %463 = vmatprep.subr.mxu0 0.0
  %464 = vmatpush1.msra.mxu0 0.0
  %465 = vmatprep.subr.mxu0 0.0
  %466 = vmatpush1.msra.mxu0 0.0
  %467 = vmatprep.subr.mxu0 0.0
  %468 = vmatpush1.msra.mxu0 0.0
  %469 = vmatprep.subr.mxu0 0.0
  %470 = vmatpush1.msra.mxu0 0.0
  %471 = vmatprep.mubr.f32.mxu0 0.0
  %472 = vmatmul.mubr.f32.gmra.mrb[0].mxu0 %v307
  %v473 = vpop.f32.mrb[0].mxu0
  %v474 = vadd.f32 %v288, %v473
  %v475 = vpop.f32.mrb[0].mxu0
  %476 = vmatprep.mubr.f32.mxu0 0.0
  %477 = vmatmul.mubr.f32.gmra.mrb[0].mxu0 %v310
  %v478 = vpop.f32.mrb[0].mxu0
  %v479 = vadd.f32 %v293, %v478
  %v480 = vpop.f32.mrb[0].mxu0
  %481 = vmatprep.mubr.f32.mxu0 0.0
  %482 = vmatmul.mubr.f32.gmra.mrb[0].mxu0 %v313
  %v483 = vpop.f32.mrb[0].mxu0
  %v484 = vadd.f32 %v298, %v483
  %v485 = vpop.f32.mrb[0].mxu0
  %486 = vmatprep.mubr.f32.mxu0 0.0
  %487 = vmatmul.mubr.f32.gmra.mrb[0].mxu0 %v316
  %v488 = vpop.f32.mrb[0].mxu0
  %v489 = vadd.f32 %v303, %v488
  %v490 = vpop.f32.mrb[0].mxu0
  %491 = vdwg.mxu0
  %v493 = vlaneseq
  %v494 = vshrl.u32 %v493, 7
  %v495 = vsub.s32 0, %v494
  %v496 = vrot.slane %v29, %v495
  %v497 = vlaneseq
  %v498 = vshrl.u32 %v497, 7
  %v499 = vsub.s32 1, %v498
  %v500 = vrot.slane %v29, %v499
  %v501 = vlaneseq
  %v502 = vshrl.u32 %v501, 7
  %v503 = vsub.s32 2, %v502
  %v504 = vrot.slane %v29, %v503
  %v508 = vmul.f32 %v385, %v496
  %v509 = vmul.f32 %v387, %v500
  %v510 = vmul.f32 %v474, %v504
  %v511 = vmul.f32 %v391, %v496
  %v512 = vmul.f32 %v393, %v500
  %v513 = vmul.f32 %v479, %v504
  %v514 = vmul.f32 %v397, %v496
  %v515 = vmul.f32 %v399, %v500
  %v516 = vmul.f32 %v484, %v504
  %v517 = vmul.f32 %v403, %v496
  %v518 = vmul.f32 %v405, %v500
  %v519 = vmul.f32 %v489, %v504
  %v520 = vadd.f32 %v508, %v509
  %v521 = vadd.f32 %v520, %v510
  %522 = vadd.xlane.f32.xlu0 %v521
  %v523 = vpop.xlane.xlu0 %522
  %v524 = vadd.f32 %v511, %v512
  %v525 = vadd.f32 %v524, %v513
  %526 = vadd.xlane.f32.xlu0 %v525
  %v527 = vpop.xlane.xlu0 %526
  %v528 = vadd.f32 %v514, %v515
  %v529 = vadd.f32 %v528, %v516
  %530 = vadd.xlane.f32.xlu0 %v529
  %v531 = vpop.xlane.xlu0 %530
  %v532 = vadd.f32 %v517, %v518
  %v533 = vadd.f32 %v532, %v519
  %534 = vadd.xlane.f32.xlu0 %v533
  %v535 = vpop.xlane.xlu0 %534
  %vm536 = vcmask 261120
  %v538 = vsel %vm536, %v30, 0
  %v541 = vsel %vm536, %v31, 0
  %543 = vmatprep.subr.mxu0 0.0
  %544 = vmatpush1.msra.mxu0 %v523
  %545 = vmatprep.subr.mxu0 0.0
  %546 = vmatpush1.msra.mxu0 %v527
  %547 = vmatprep.subr.mxu0 0.0
  %548 = vmatpush1.msra.mxu0 %v531
  %549 = vmatprep.subr.mxu0 0.0
  %550 = vmatpush1.msra.mxu0 %v535
  %551 = vmatprep.subr.mxu0 0.0
  %552 = vmatpush1.msra.mxu0 0.0
  %553 = vmatprep.subr.mxu0 0.0
  %554 = vmatpush1.msra.mxu0 0.0
  %555 = vmatprep.subr.mxu0 0.0
  %556 = vmatpush1.msra.mxu0 0.0
  %557 = vmatprep.subr.mxu0 0.0
  %558 = vmatpush1.msra.mxu0 0.0
  %559 = vmatprep.subr.mxu0 0.0
  %560 = vmatpush1.msra.mxu0 0.0
  %561 = vmatprep.subr.mxu0 0.0
  %562 = vmatpush1.msra.mxu0 0.0
  %563 = vmatprep.subr.mxu0 0.0
  %564 = vmatpush1.msra.mxu0 0.0
  %565 = vmatprep.subr.mxu0 0.0
  %566 = vmatpush1.msra.mxu0 0.0
  %567 = vmatprep.subr.mxu0 0.0
  %568 = vmatpush1.msra.mxu0 0.0
  %569 = vmatprep.subr.mxu0 0.0
  %570 = vmatpush1.msra.mxu0 0.0
  %571 = vmatprep.subr.mxu0 0.0
  %572 = vmatpush1.msra.mxu0 0.0
  %573 = vmatprep.subr.mxu0 0.0
  %574 = vmatpush1.msra.mxu0 0.0
  %575 = vmatprep.subr.mxu0 0.0
  %576 = vmatpush1.msra.mxu0 0.0
  %577 = vmatprep.subr.mxu0 0.0
  %578 = vmatpush1.msra.mxu0 0.0
  %579 = vmatprep.subr.mxu0 0.0
  %580 = vmatpush1.msra.mxu0 0.0
  %581 = vmatprep.subr.mxu0 0.0
  %582 = vmatpush1.msra.mxu0 0.0
  %583 = vmatprep.subr.mxu0 0.0
  %584 = vmatpush1.msra.mxu0 0.0
  %585 = vmatprep.subr.mxu0 0.0
  %586 = vmatpush1.msra.mxu0 0.0
  %587 = vmatprep.subr.mxu0 0.0
  %588 = vmatpush1.msra.mxu0 0.0
  %589 = vmatprep.subr.mxu0 0.0
  %590 = vmatpush1.msra.mxu0 0.0
  %591 = vmatprep.subr.mxu0 0.0
  %592 = vmatpush1.msra.mxu0 0.0
  %593 = vmatprep.subr.mxu0 0.0
  %594 = vmatpush1.msra.mxu0 0.0
  %595 = vmatprep.subr.mxu0 0.0
  %596 = vmatpush1.msra.mxu0 0.0
  %597 = vmatprep.subr.mxu0 0.0
  %598 = vmatpush1.msra.mxu0 0.0
  %599 = vmatprep.subr.mxu0 0.0
  %600 = vmatpush1.msra.mxu0 0.0
  %601 = vmatprep.subr.mxu0 0.0
  %602 = vmatpush1.msra.mxu0 0.0
  %603 = vmatprep.subr.mxu0 0.0
  %604 = vmatpush1.msra.mxu0 0.0
  %605 = vmatprep.subr.mxu0 0.0
  %606 = vmatpush1.msra.mxu0 0.0
  %607 = vmatprep.mubr.f32.mxu0 0.0
  %608 = vmatmul.mubr.f32.gmra.mrb[0].mxu0 %v538
  %v609 = vpop.f32.mrb[0].mxu0
  %v610 = vadd.f32 0.0, %v609
  %v611 = vpop.f32.mrb[0].mxu0
  %612 = vmatprep.mubr.f32.mxu0 0.0
  %613 = vmatmul.mubr.f32.gmra.mrb[0].mxu0 %v541
  %v614 = vpop.f32.mrb[0].mxu0
  %v615 = vadd.f32 0.0, %v614
  %v616 = vpop.f32.mrb[0].mxu0
  %617 = vdwg.mxu0
  %vm618 = vcmask 130048
  %v620 = vsel %vm618, %v32, 0
  %v623 = vsel %vm618, %v33, 0
  %v626 = vsel %vm618, %v34, 0
  %v629 = vsel %vm618, %v35, 0
  %631 = vmatprep.subr.mxu0 0.0
  %632 = vmatpush1.msra.mxu0 %v610
  %633 = vmatprep.subr.mxu0 0.0
  %634 = vmatpush1.msra.mxu0 %v615
  %635 = vmatprep.subr.mxu0 0.0
  %636 = vmatpush1.msra.mxu0 0.0
  %637 = vmatprep.subr.mxu0 0.0
  %638 = vmatpush1.msra.mxu0 0.0
  %639 = vmatprep.subr.mxu0 0.0
  %640 = vmatpush1.msra.mxu0 0.0
  %641 = vmatprep.subr.mxu0 0.0
  %642 = vmatpush1.msra.mxu0 0.0
  %643 = vmatprep.subr.mxu0 0.0
  %644 = vmatpush1.msra.mxu0 0.0
  %645 = vmatprep.subr.mxu0 0.0
  %646 = vmatpush1.msra.mxu0 0.0
  %647 = vmatprep.subr.mxu0 0.0
  %648 = vmatpush1.msra.mxu0 0.0
  %649 = vmatprep.subr.mxu0 0.0
  %650 = vmatpush1.msra.mxu0 0.0
  %651 = vmatprep.subr.mxu0 0.0
  %652 = vmatpush1.msra.mxu0 0.0
  %653 = vmatprep.subr.mxu0 0.0
  %654 = vmatpush1.msra.mxu0 0.0
  %655 = vmatprep.subr.mxu0 0.0
  %656 = vmatpush1.msra.mxu0 0.0
  %657 = vmatprep.subr.mxu0 0.0
  %658 = vmatpush1.msra.mxu0 0.0
  %659 = vmatprep.subr.mxu0 0.0
  %660 = vmatpush1.msra.mxu0 0.0
  %661 = vmatprep.subr.mxu0 0.0
  %662 = vmatpush1.msra.mxu0 0.0
  %663 = vmatprep.subr.mxu0 0.0
  %664 = vmatpush1.msra.mxu0 0.0
  %665 = vmatprep.subr.mxu0 0.0
  %666 = vmatpush1.msra.mxu0 0.0
  %667 = vmatprep.subr.mxu0 0.0
  %668 = vmatpush1.msra.mxu0 0.0
  %669 = vmatprep.subr.mxu0 0.0
  %670 = vmatpush1.msra.mxu0 0.0
  %671 = vmatprep.subr.mxu0 0.0
  %672 = vmatpush1.msra.mxu0 0.0
  %673 = vmatprep.subr.mxu0 0.0
  %674 = vmatpush1.msra.mxu0 0.0
  %675 = vmatprep.subr.mxu0 0.0
  %676 = vmatpush1.msra.mxu0 0.0
  %677 = vmatprep.subr.mxu0 0.0
  %678 = vmatpush1.msra.mxu0 0.0
  %679 = vmatprep.subr.mxu0 0.0
  %680 = vmatpush1.msra.mxu0 0.0
  %681 = vmatprep.subr.mxu0 0.0
  %682 = vmatpush1.msra.mxu0 0.0
  %683 = vmatprep.subr.mxu0 0.0
  %684 = vmatpush1.msra.mxu0 0.0
  %685 = vmatprep.subr.mxu0 0.0
  %686 = vmatpush1.msra.mxu0 0.0
  %687 = vmatprep.subr.mxu0 0.0
  %688 = vmatpush1.msra.mxu0 0.0
  %689 = vmatprep.subr.mxu0 0.0
  %690 = vmatpush1.msra.mxu0 0.0
  %691 = vmatprep.subr.mxu0 0.0
  %692 = vmatpush1.msra.mxu0 0.0
  %693 = vmatprep.subr.mxu0 0.0
  %694 = vmatpush1.msra.mxu0 0.0
  %695 = vmatprep.mubr.f32.mxu0 0.0
  %696 = vmatmul.mubr.f32.gmra.mrb[0].mxu0 %v620
  %v697 = vpop.f32.mrb[0].mxu0
  %v698 = vadd.f32 0.0, %v697
  %v699 = vpop.f32.mrb[0].mxu0
  %700 = vmatprep.mubr.f32.mxu0 0.0
  %701 = vmatmul.mubr.f32.gmra.mrb[0].mxu0 %v623
  %v702 = vpop.f32.mrb[0].mxu0
  %v703 = vadd.f32 0.0, %v702
  %v704 = vpop.f32.mrb[0].mxu0
  %705 = vmatprep.mubr.f32.mxu0 0.0
  %706 = vmatmul.mubr.f32.gmra.mrb[0].mxu0 %v626
  %v707 = vpop.f32.mrb[0].mxu0
  %v708 = vadd.f32 0.0, %v707
  %v709 = vpop.f32.mrb[0].mxu0
  %710 = vmatprep.mubr.f32.mxu0 0.0
  %711 = vmatmul.mubr.f32.gmra.mrb[0].mxu0 %v629
  %v712 = vpop.f32.mrb[0].mxu0
  %v713 = vadd.f32 0.0, %v712
  %v714 = vpop.f32.mrb[0].mxu0
  %715 = vdwg.mxu0
  %v716 = vmul.f32 %v698, 0.001953125
  %v717 = vmul.f32 %v703, 0.001953125
  %v718 = vmul.f32 %v708, 0.001953125
  %v719 = vmul.f32 %v713, 0.001953125
  %721 = vset.pattern.permute.xlu0 0
  %722 = vperm.xlu0 %721, %v716
  %v723 = vpop.permute.xlu0 %722
  %726 = vset.pattern.permute.xlu0 0
  %727 = vperm.xlu0 %726, %v717
  %v728 = vpop.permute.xlu0 %727
  %731 = vset.pattern.permute.xlu0 0
  %732 = vperm.xlu0 %731, %v718
  %v733 = vpop.permute.xlu0 %732
  %736 = vset.pattern.permute.xlu0 0
  %737 = vperm.xlu0 %736, %v719
  %v738 = vpop.permute.xlu0 %737
  %v740 = vsub.f32 %v385, %v723
  %v741 = vsub.f32 %v387, %v723
  %v742 = vsub.f32 %v474, %v723
  %v743 = vsub.f32 %v391, %v728
  %v744 = vsub.f32 %v393, %v728
  %v745 = vsub.f32 %v479, %v728
  %v746 = vsub.f32 %v397, %v733
  %v747 = vsub.f32 %v399, %v733
  %v748 = vsub.f32 %v484, %v733
  %v749 = vsub.f32 %v403, %v738
  %v750 = vsub.f32 %v405, %v738
  %v751 = vsub.f32 %v489, %v738
  %v752 = vmul.f32 %v740, %v740
  %v753 = vmul.f32 %v741, %v741
  %v754 = vmul.f32 %v742, %v742
  %v755 = vmul.f32 %v743, %v743
  %v756 = vmul.f32 %v744, %v744
  %v757 = vmul.f32 %v745, %v745
  %v758 = vmul.f32 %v746, %v746
  %v759 = vmul.f32 %v747, %v747
  %v760 = vmul.f32 %v748, %v748
  %v761 = vmul.f32 %v749, %v749
  %v762 = vmul.f32 %v750, %v750
  %v763 = vmul.f32 %v751, %v751
  %v764 = vmul.f32 %v752, %v496
  %v765 = vmul.f32 %v753, %v500
  %v766 = vmul.f32 %v754, %v504
  %v767 = vmul.f32 %v755, %v496
  %v768 = vmul.f32 %v756, %v500
  %v769 = vmul.f32 %v757, %v504
  %v770 = vmul.f32 %v758, %v496
  %v771 = vmul.f32 %v759, %v500
  %v772 = vmul.f32 %v760, %v504
  %v773 = vmul.f32 %v761, %v496
  %v774 = vmul.f32 %v762, %v500
  %v775 = vmul.f32 %v763, %v504
  %v776 = vadd.f32 %v764, %v765
  %v777 = vadd.f32 %v776, %v766
  %778 = vadd.xlane.f32.xlu0 %v777
  %v779 = vpop.xlane.xlu0 %778
  %v780 = vadd.f32 %v767, %v768
  %v781 = vadd.f32 %v780, %v769
  %782 = vadd.xlane.f32.xlu0 %v781
  %v783 = vpop.xlane.xlu0 %782
  %v784 = vadd.f32 %v770, %v771
  %v785 = vadd.f32 %v784, %v772
  %786 = vadd.xlane.f32.xlu0 %v785
  %v787 = vpop.xlane.xlu0 %786
  %v788 = vadd.f32 %v773, %v774
  %v789 = vadd.f32 %v788, %v775
  %790 = vadd.xlane.f32.xlu0 %v789
  %v791 = vpop.xlane.xlu0 %790
  %792 = vmatprep.subr.mxu0 0.0
  %793 = vmatpush1.msra.mxu0 %v779
  %794 = vmatprep.subr.mxu0 0.0
  %795 = vmatpush1.msra.mxu0 %v783
  %796 = vmatprep.subr.mxu0 0.0
  %797 = vmatpush1.msra.mxu0 %v787
  %798 = vmatprep.subr.mxu0 0.0
  %799 = vmatpush1.msra.mxu0 %v791
  %800 = vmatprep.subr.mxu0 0.0
  %801 = vmatpush1.msra.mxu0 0.0
  %802 = vmatprep.subr.mxu0 0.0
  %803 = vmatpush1.msra.mxu0 0.0
  %804 = vmatprep.subr.mxu0 0.0
  %805 = vmatpush1.msra.mxu0 0.0
  %806 = vmatprep.subr.mxu0 0.0
  %807 = vmatpush1.msra.mxu0 0.0
  %808 = vmatprep.subr.mxu0 0.0
  %809 = vmatpush1.msra.mxu0 0.0
  %810 = vmatprep.subr.mxu0 0.0
  %811 = vmatpush1.msra.mxu0 0.0
  %812 = vmatprep.subr.mxu0 0.0
  %813 = vmatpush1.msra.mxu0 0.0
  %814 = vmatprep.subr.mxu0 0.0
  %815 = vmatpush1.msra.mxu0 0.0
  %816 = vmatprep.subr.mxu0 0.0
  %817 = vmatpush1.msra.mxu0 0.0
  %818 = vmatprep.subr.mxu0 0.0
  %819 = vmatpush1.msra.mxu0 0.0
  %820 = vmatprep.subr.mxu0 0.0
  %821 = vmatpush1.msra.mxu0 0.0
  %822 = vmatprep.subr.mxu0 0.0
  %823 = vmatpush1.msra.mxu0 0.0
  %824 = vmatprep.subr.mxu0 0.0
  %825 = vmatpush1.msra.mxu0 0.0
  %826 = vmatprep.subr.mxu0 0.0
  %827 = vmatpush1.msra.mxu0 0.0
  %828 = vmatprep.subr.mxu0 0.0
  %829 = vmatpush1.msra.mxu0 0.0
  %830 = vmatprep.subr.mxu0 0.0
  %831 = vmatpush1.msra.mxu0 0.0
  %832 = vmatprep.subr.mxu0 0.0
  %833 = vmatpush1.msra.mxu0 0.0
  %834 = vmatprep.subr.mxu0 0.0
  %835 = vmatpush1.msra.mxu0 0.0
  %836 = vmatprep.subr.mxu0 0.0
  %837 = vmatpush1.msra.mxu0 0.0
  %838 = vmatprep.subr.mxu0 0.0
  %839 = vmatpush1.msra.mxu0 0.0
  %840 = vmatprep.subr.mxu0 0.0
  %841 = vmatpush1.msra.mxu0 0.0
  %842 = vmatprep.subr.mxu0 0.0
  %843 = vmatpush1.msra.mxu0 0.0
  %844 = vmatprep.subr.mxu0 0.0
  %845 = vmatpush1.msra.mxu0 0.0
  %846 = vmatprep.subr.mxu0 0.0
  %847 = vmatpush1.msra.mxu0 0.0
  %848 = vmatprep.subr.mxu0 0.0
  %849 = vmatpush1.msra.mxu0 0.0
  %850 = vmatprep.subr.mxu0 0.0
  %851 = vmatpush1.msra.mxu0 0.0
  %852 = vmatprep.subr.mxu0 0.0
  %853 = vmatpush1.msra.mxu0 0.0
  %854 = vmatprep.subr.mxu0 0.0
  %855 = vmatpush1.msra.mxu0 0.0
  %856 = vmatprep.mubr.f32.mxu0 0.0
  %857 = vmatmul.mubr.f32.gmra.mrb[0].mxu0 %v538
  %v858 = vpop.f32.mrb[0].mxu0
  %v859 = vadd.f32 0.0, %v858
  %v860 = vpop.f32.mrb[0].mxu0
  %861 = vmatprep.mubr.f32.mxu0 0.0
  %862 = vmatmul.mubr.f32.gmra.mrb[0].mxu0 %v541
  %v863 = vpop.f32.mrb[0].mxu0
  %v864 = vadd.f32 0.0, %v863
  %v865 = vpop.f32.mrb[0].mxu0
  %866 = vdwg.mxu0
  %867 = vmatprep.subr.mxu0 0.0
  %868 = vmatpush1.msra.mxu0 %v859
  %869 = vmatprep.subr.mxu0 0.0
  %870 = vmatpush1.msra.mxu0 %v864
  %871 = vmatprep.subr.mxu0 0.0
  %872 = vmatpush1.msra.mxu0 0.0
  %873 = vmatprep.subr.mxu0 0.0
  %874 = vmatpush1.msra.mxu0 0.0
  %875 = vmatprep.subr.mxu0 0.0
  %876 = vmatpush1.msra.mxu0 0.0
  %877 = vmatprep.subr.mxu0 0.0
  %878 = vmatpush1.msra.mxu0 0.0
  %879 = vmatprep.subr.mxu0 0.0
  %880 = vmatpush1.msra.mxu0 0.0
  %881 = vmatprep.subr.mxu0 0.0
  %882 = vmatpush1.msra.mxu0 0.0
  %883 = vmatprep.subr.mxu0 0.0
  %884 = vmatpush1.msra.mxu0 0.0
  %885 = vmatprep.subr.mxu0 0.0
  %886 = vmatpush1.msra.mxu0 0.0
  %887 = vmatprep.subr.mxu0 0.0
  %888 = vmatpush1.msra.mxu0 0.0
  %889 = vmatprep.subr.mxu0 0.0
  %890 = vmatpush1.msra.mxu0 0.0
  %891 = vmatprep.subr.mxu0 0.0
  %892 = vmatpush1.msra.mxu0 0.0
  %893 = vmatprep.subr.mxu0 0.0
  %894 = vmatpush1.msra.mxu0 0.0
  %895 = vmatprep.subr.mxu0 0.0
  %896 = vmatpush1.msra.mxu0 0.0
  %897 = vmatprep.subr.mxu0 0.0
  %898 = vmatpush1.msra.mxu0 0.0
  %899 = vmatprep.subr.mxu0 0.0
  %900 = vmatpush1.msra.mxu0 0.0
  %901 = vmatprep.subr.mxu0 0.0
  %902 = vmatpush1.msra.mxu0 0.0
  %903 = vmatprep.subr.mxu0 0.0
  %904 = vmatpush1.msra.mxu0 0.0
  %905 = vmatprep.subr.mxu0 0.0
  %906 = vmatpush1.msra.mxu0 0.0
  %907 = vmatprep.subr.mxu0 0.0
  %908 = vmatpush1.msra.mxu0 0.0
  %909 = vmatprep.subr.mxu0 0.0
  %910 = vmatpush1.msra.mxu0 0.0
  %911 = vmatprep.subr.mxu0 0.0
  %912 = vmatpush1.msra.mxu0 0.0
  %913 = vmatprep.subr.mxu0 0.0
  %914 = vmatpush1.msra.mxu0 0.0
  %915 = vmatprep.subr.mxu0 0.0
  %916 = vmatpush1.msra.mxu0 0.0
  %917 = vmatprep.subr.mxu0 0.0
  %918 = vmatpush1.msra.mxu0 0.0
  %919 = vmatprep.subr.mxu0 0.0
  %920 = vmatpush1.msra.mxu0 0.0
  %921 = vmatprep.subr.mxu0 0.0
  %922 = vmatpush1.msra.mxu0 0.0
  %923 = vmatprep.subr.mxu0 0.0
  %924 = vmatpush1.msra.mxu0 0.0
  %925 = vmatprep.subr.mxu0 0.0
  %926 = vmatpush1.msra.mxu0 0.0
  %927 = vmatprep.subr.mxu0 0.0
  %928 = vmatpush1.msra.mxu0 0.0
  %929 = vmatprep.subr.mxu0 0.0
  %930 = vmatpush1.msra.mxu0 0.0
  %931 = vmatprep.mubr.f32.mxu0 0.0
  %932 = vmatmul.mubr.f32.gmra.mrb[0].mxu0 %v620
  %v933 = vpop.f32.mrb[0].mxu0
  %v934 = vadd.f32 0.0, %v933
  %v935 = vpop.f32.mrb[0].mxu0
  %936 = vmatprep.mubr.f32.mxu0 0.0
  %937 = vmatmul.mubr.f32.gmra.mrb[0].mxu0 %v623
  %v938 = vpop.f32.mrb[0].mxu0
  %v939 = vadd.f32 0.0, %v938
  %v940 = vpop.f32.mrb[0].mxu0
  %941 = vmatprep.mubr.f32.mxu0 0.0
  %942 = vmatmul.mubr.f32.gmra.mrb[0].mxu0 %v626
  %v943 = vpop.f32.mrb[0].mxu0
  %v944 = vadd.f32 0.0, %v943
  %v945 = vpop.f32.mrb[0].mxu0
  %946 = vmatprep.mubr.f32.mxu0 0.0
  %947 = vmatmul.mubr.f32.gmra.mrb[0].mxu0 %v629
  %v948 = vpop.f32.mrb[0].mxu0
  %v949 = vadd.f32 0.0, %v948
  %v950 = vpop.f32.mrb[0].mxu0
  %951 = vdwg.mxu0
  %v952 = vmul.f32 %v934, 0.001953125
  %v953 = vmul.f32 %v939, 0.001953125
  %v954 = vmul.f32 %v944, 0.001953125
  %v955 = vmul.f32 %v949, 0.001953125
  %v956 = vadd.f32 %v952, 1e-05
  %v957 = vadd.f32 %v953, 1e-05
  %v958 = vadd.f32 %v954, 1e-05
  %v959 = vadd.f32 %v955, 1e-05
  %v960 = vrsqrt.pop %v956
  %v961 = vrsqrt.pop %v957
  %v962 = vrsqrt.pop %v958
  %v963 = vrsqrt.pop %v959
  %v964 = vld [vmem:[%s3] sm:$0xff]
  %v965 = vld [vmem:[%s3 + $0x8] sm:$0xff]
  %v966 = vld [vmem:[%s3 + $0x10] sm:$0xff]
  %v967 = vld [vmem:[%s3 + $0x18] sm:$0xff]
  %v968 = vmul.f32 %v960, %v964
  %v969 = vmul.f32 %v961, %v965
  %v970 = vmul.f32 %v962, %v966
  %v971 = vmul.f32 %v963, %v967
  %973 = vset.pattern.permute.xlu0 0
  %974 = vperm.xlu0 %973, %v968
  %v975 = vpop.permute.xlu0 %974
  %978 = vset.pattern.permute.xlu0 0
  %979 = vperm.xlu0 %978, %v969
  %v980 = vpop.permute.xlu0 %979
  %983 = vset.pattern.permute.xlu0 0
  %984 = vperm.xlu0 %983, %v970
  %v985 = vpop.permute.xlu0 %984
  %988 = vset.pattern.permute.xlu0 0
  %989 = vperm.xlu0 %988, %v971
  %v990 = vpop.permute.xlu0 %989
  %v992 = vmul.f32 %v740, %v975
  %v993 = vmul.f32 %v741, %v975
  %v994 = vmul.f32 %v742, %v975
  %v995 = vmul.f32 %v743, %v980
  %v996 = vmul.f32 %v744, %v980
  %v997 = vmul.f32 %v745, %v980
  %v998 = vmul.f32 %v746, %v985
  %v999 = vmul.f32 %v747, %v985
  %v1000 = vmul.f32 %v748, %v985
  %v1001 = vmul.f32 %v749, %v990
  %v1002 = vmul.f32 %v750, %v990
  %v1003 = vmul.f32 %v751, %v990
  %v1004 = vld [vmem:[%s4] sm:$0xff]
  %v1005 = vld [vmem:[%s4 + $0x8] sm:$0xff]
  %v1006 = vld [vmem:[%s4 + $0x10] sm:$0xff]
  %v1007 = vld [vmem:[%s4 + $0x18] sm:$0xff]
  %1009 = vset.pattern.permute.xlu0 0
  %1010 = vperm.xlu0 %1009, %v1004
  %v1011 = vpop.permute.xlu0 %1010
  %1014 = vset.pattern.permute.xlu0 0
  %1015 = vperm.xlu0 %1014, %v1005
  %v1016 = vpop.permute.xlu0 %1015
  %1019 = vset.pattern.permute.xlu0 0
  %1020 = vperm.xlu0 %1019, %v1006
  %v1021 = vpop.permute.xlu0 %1020
  %1024 = vset.pattern.permute.xlu0 0
  %1025 = vperm.xlu0 %1024, %v1007
  %v1026 = vpop.permute.xlu0 %1025
  %v1028 = vadd.f32 %v992, %v1011
  %v1029 = vadd.f32 %v993, %v1011
  %v1030 = vadd.f32 %v994, %v1011
  %v1031 = vadd.f32 %v995, %v1016
  %v1032 = vadd.f32 %v996, %v1016
  %v1033 = vadd.f32 %v997, %v1016
  %v1034 = vadd.f32 %v998, %v1021
  %v1035 = vadd.f32 %v999, %v1021
  %v1036 = vadd.f32 %v1000, %v1021
  %v1037 = vadd.f32 %v1001, %v1026
  %v1038 = vadd.f32 %v1002, %v1026
  %v1039 = vadd.f32 %v1003, %v1026
  %1040 = vst [vmem:[%s8] sm:$0xff] %v1028
  %1041 = vst [vmem:[%s8 + $0x8] sm:$0xff] %v1029
  %1042 = vst [vmem:[%s8 + $0x10] sm:$0xff] %v1030
  %1043 = vst [vmem:[%s8 + $0x18] sm:$0xff] %v1031
  %1044 = vst [vmem:[%s8 + $0x20] sm:$0xff] %v1032
  %1045 = vst [vmem:[%s8 + $0x28] sm:$0xff] %v1033
  %1046 = vst [vmem:[%s8 + $0x30] sm:$0xff] %v1034
  %1047 = vst [vmem:[%s8 + $0x38] sm:$0xff] %v1035
  %1048 = vst [vmem:[%s8 + $0x40] sm:$0xff] %v1036
  %1049 = vst [vmem:[%s8 + $0x48] sm:$0xff] %v1037
  %1050 = vst [vmem:[%s8 + $0x50] sm:$0xff] %v1038
  %1051 = vst [vmem:[%s8 + $0x58] sm:$0xff] %v1039
  %s1052 = scalar_lea.vmem %s0, 32
  %v1053 = vld [vmem:[%s1052] sm:$0xff]
  %v1054 = vld [vmem:[%s1052 + $0x8] sm:$0xff]
  %v1055 = vld [vmem:[%s1052 + $0x10] sm:$0xff]
  %1056 = vst [vmem:[#allocation2] sm:$0xff] %v1053
  %1057 = vst [vmem:[#allocation2 + $0x8] sm:$0xff] %v1054
  %1058 = vst [vmem:[#allocation2 + $0x10] sm:$0xff] %v1055
  %v1059 = vld [vmem:[%s1052] sm:$0xff]
  %v1060 = vld [vmem:[%s1052 + $0x8] sm:$0xff]
  %v1061 = vld [vmem:[%s1052 + $0x10] sm:$0xff]
  %v1062 = vld [vmem:[%s1052 + $0x18] sm:$0xff]
  %1067 = vrot.lane.b32.xlu0 %v1059, 127
  %v1068 = vpop.permute.xlu0 %1067
  %1069 = vrot.lane.b32.xlu0 %v1060, 127
  %v1070 = vpop.permute.xlu0 %1069
  %1071 = vrot.lane.b32.xlu0 %v1061, 127
  %v1072 = vpop.permute.xlu0 %1071
  %1073 = vrot.lane.b32.xlu0 %v1062, 127
  %v1074 = vpop.permute.xlu0 %1073
  %v1075 = vsel %vm62, %v1068, %v1070
  %v1076 = vsel %vm62, %v1070, %v1072
  %v1077 = vsel %vm62, %v1072, %v1074
  %1081 = vst [vmem:[#allocation2 + $0x18] sm:$0xff] %v1075
  %1082 = vst [vmem:[#allocation2 + $0x20] sm:$0xff] %v1076
  %1083 = vst [vmem:[#allocation2 + $0x28] sm:$0xff] %v1077
  %v1084 = vld [vmem:[%s1052] sm:$0xff]
  %v1085 = vld [vmem:[%s1052 + $0x8] sm:$0xff]
  %v1086 = vld [vmem:[%s1052 + $0x10] sm:$0xff]
  %v1087 = vld [vmem:[%s1052 + $0x18] sm:$0xff]
  %1092 = vrot.lane.b32.xlu0 %v1084, 126
  %v1093 = vpop.permute.xlu0 %1092
  %1094 = vrot.lane.b32.xlu0 %v1085, 126
  %v1095 = vpop.permute.xlu0 %1094
  %1096 = vrot.lane.b32.xlu0 %v1086, 126
  %v1097 = vpop.permute.xlu0 %1096
  %1098 = vrot.lane.b32.xlu0 %v1087, 126
  %v1099 = vpop.permute.xlu0 %1098
  %v1100 = vsel %vm88, %v1093, %v1095
  %v1101 = vsel %vm88, %v1095, %v1097
  %v1102 = vsel %vm88, %v1097, %v1099
  %1106 = vst [vmem:[#allocation2 + $0x30] sm:$0xff] %v1100
  %1107 = vst [vmem:[#allocation2 + $0x38] sm:$0xff] %v1101
  %1108 = vst [vmem:[#allocation2 + $0x40] sm:$0xff] %v1102
  %v1109 = vld [vmem:[%s1052] sm:$0xff]
  %v1110 = vld [vmem:[%s1052 + $0x8] sm:$0xff]
  %v1111 = vld [vmem:[%s1052 + $0x10] sm:$0xff]
  %v1112 = vld [vmem:[%s1052 + $0x18] sm:$0xff]
  %1117 = vrot.lane.b32.xlu0 %v1109, 110
  %v1118 = vpop.permute.xlu0 %1117
  %1119 = vrot.lane.b32.xlu0 %v1110, 110
  %v1120 = vpop.permute.xlu0 %1119
  %1121 = vrot.lane.b32.xlu0 %v1111, 110
  %v1122 = vpop.permute.xlu0 %1121
  %1123 = vrot.lane.b32.xlu0 %v1112, 110
  %v1124 = vpop.permute.xlu0 %1123
  %v1125 = vsel %vm114, %v1118, %v1120
  %v1126 = vsel %vm114, %v1120, %v1122
  %v1127 = vsel %vm114, %v1122, %v1124
  %1131 = vst [vmem:[#allocation2 + $0x48] sm:$0xff] %v1125
  %1132 = vst [vmem:[#allocation2 + $0x50] sm:$0xff] %v1126
  %1133 = vst [vmem:[#allocation2 + $0x58] sm:$0xff] %v1127
  %v1134 = vld [vmem:[%s1052] sm:$0xff]
  %v1135 = vld [vmem:[%s1052 + $0x8] sm:$0xff]
  %v1136 = vld [vmem:[%s1052 + $0x10] sm:$0xff]
  %v1137 = vld [vmem:[%s1052 + $0x18] sm:$0xff]
  %1142 = vrot.lane.b32.xlu0 %v1134, 109
  %v1143 = vpop.permute.xlu0 %1142
  %1144 = vrot.lane.b32.xlu0 %v1135, 109
  %v1145 = vpop.permute.xlu0 %1144
  %1146 = vrot.lane.b32.xlu0 %v1136, 109
  %v1147 = vpop.permute.xlu0 %1146
  %1148 = vrot.lane.b32.xlu0 %v1137, 109
  %v1149 = vpop.permute.xlu0 %1148
  %v1150 = vsel %vm140, %v1143, %v1145
  %v1151 = vsel %vm140, %v1145, %v1147
  %v1152 = vsel %vm140, %v1147, %v1149
  %1156 = vst [vmem:[#allocation2 + $0x60] sm:$0xff] %v1150
  %1157 = vst [vmem:[#allocation2 + $0x68] sm:$0xff] %v1151
  %1158 = vst [vmem:[#allocation2 + $0x70] sm:$0xff] %v1152
  %v1159 = vld [vmem:[%s1052] sm:$0xff]
  %v1160 = vld [vmem:[%s1052 + $0x8] sm:$0xff]
  %v1161 = vld [vmem:[%s1052 + $0x10] sm:$0xff]
  %v1162 = vld [vmem:[%s1052 + $0x18] sm:$0xff]
  %1167 = vrot.lane.b32.xlu0 %v1159, 108
  %v1168 = vpop.permute.xlu0 %1167
  %1169 = vrot.lane.b32.xlu0 %v1160, 108
  %v1170 = vpop.permute.xlu0 %1169
  %1171 = vrot.lane.b32.xlu0 %v1161, 108
  %v1172 = vpop.permute.xlu0 %1171
  %1173 = vrot.lane.b32.xlu0 %v1162, 108
  %v1174 = vpop.permute.xlu0 %1173
  %v1175 = vsel %vm166, %v1168, %v1170
  %v1176 = vsel %vm166, %v1170, %v1172
  %v1177 = vsel %vm166, %v1172, %v1174
  %1181 = vst [vmem:[#allocation2 + $0x78] sm:$0xff] %v1175
  %1182 = vst [vmem:[#allocation2 + $0x80] sm:$0xff] %v1176
  %1183 = vst [vmem:[#allocation2 + $0x88] sm:$0xff] %v1177
  %v1184 = vld [vmem:[%s1052] sm:$0xff]
  %v1185 = vld [vmem:[%s1052 + $0x8] sm:$0xff]
  %v1186 = vld [vmem:[%s1052 + $0x10] sm:$0xff]
  %v1187 = vld [vmem:[%s1052 + $0x18] sm:$0xff]
  %1192 = vrot.lane.b32.xlu0 %v1184, 92
  %v1193 = vpop.permute.xlu0 %1192
  %1194 = vrot.lane.b32.xlu0 %v1185, 92
  %v1195 = vpop.permute.xlu0 %1194
  %1196 = vrot.lane.b32.xlu0 %v1186, 92
  %v1197 = vpop.permute.xlu0 %1196
  %1198 = vrot.lane.b32.xlu0 %v1187, 92
  %v1199 = vpop.permute.xlu0 %1198
  %v1200 = vsel %vm192, %v1193, %v1195
  %v1201 = vsel %vm192, %v1195, %v1197
  %v1202 = vsel %vm192, %v1197, %v1199
  %1206 = vst [vmem:[#allocation2 + $0x90] sm:$0xff] %v1200
  %1207 = vst [vmem:[#allocation2 + $0x98] sm:$0xff] %v1201
  %1208 = vst [vmem:[#allocation2 + $0xa0] sm:$0xff] %v1202
  %v1209 = vld [vmem:[%s1052] sm:$0xff]
  %v1210 = vld [vmem:[%s1052 + $0x8] sm:$0xff]
  %v1211 = vld [vmem:[%s1052 + $0x10] sm:$0xff]
  %v1212 = vld [vmem:[%s1052 + $0x18] sm:$0xff]
  %1217 = vrot.lane.b32.xlu0 %v1209, 91
  %v1218 = vpop.permute.xlu0 %1217
  %1219 = vrot.lane.b32.xlu0 %v1210, 91
  %v1220 = vpop.permute.xlu0 %1219
  %1221 = vrot.lane.b32.xlu0 %v1211, 91
  %v1222 = vpop.permute.xlu0 %1221
  %1223 = vrot.lane.b32.xlu0 %v1212, 91
  %v1224 = vpop.permute.xlu0 %1223
  %v1225 = vsel %vm218, %v1218, %v1220
  %v1226 = vsel %vm218, %v1220, %v1222
  %v1227 = vsel %vm218, %v1222, %v1224
  %1231 = vst [vmem:[#allocation2 + $0xa8] sm:$0xff] %v1225
  %1232 = vst [vmem:[#allocation2 + $0xb0] sm:$0xff] %v1226
  %1233 = vst [vmem:[#allocation2 + $0xb8] sm:$0xff] %v1227
  %v1234 = vld [vmem:[%s1052] sm:$0xff]
  %v1235 = vld [vmem:[%s1052 + $0x8] sm:$0xff]
  %v1236 = vld [vmem:[%s1052 + $0x10] sm:$0xff]
  %v1237 = vld [vmem:[%s1052 + $0x18] sm:$0xff]
  %1242 = vrot.lane.b32.xlu0 %v1234, 90
  %v1243 = vpop.permute.xlu0 %1242
  %1244 = vrot.lane.b32.xlu0 %v1235, 90
  %v1245 = vpop.permute.xlu0 %1244
  %1246 = vrot.lane.b32.xlu0 %v1236, 90
  %v1247 = vpop.permute.xlu0 %1246
  %1248 = vrot.lane.b32.xlu0 %v1237, 90
  %v1249 = vpop.permute.xlu0 %1248
  %v1250 = vsel %vm244, %v1243, %v1245
  %v1251 = vsel %vm244, %v1245, %v1247
  %v1252 = vsel %vm244, %v1247, %v1249
  %1256 = vst [vmem:[#allocation2 + $0xc0] sm:$0xff] %v1250
  %1257 = vst [vmem:[#allocation2 + $0xc8] sm:$0xff] %v1251
  %1258 = vst [vmem:[#allocation2 + $0xd0] sm:$0xff] %v1252
  %v1259 = vld [vmem:[#allocation2] sm:$0xff]
  %v1260 = vld [vmem:[#allocation2 + $0x8] sm:$0xff]
  %v1261 = vld [vmem:[#allocation2 + $0x10] sm:$0xff]
  %v1262 = vld [vmem:[#allocation2 + $0x18] sm:$0xff]
  %v1263 = vld [vmem:[#allocation2 + $0x20] sm:$0xff]
  %v1264 = vld [vmem:[#allocation2 + $0x28] sm:$0xff]
  %v1265 = vld [vmem:[#allocation2 + $0x30] sm:$0xff]
  %v1266 = vld [vmem:[#allocation2 + $0x38] sm:$0xff]
  %v1267 = vld [vmem:[#allocation2 + $0x40] sm:$0xff]
  %v1268 = vld [vmem:[#allocation2 + $0x48] sm:$0xff]
  %v1269 = vld [vmem:[#allocation2 + $0x50] sm:$0xff]
  %v1270 = vld [vmem:[#allocation2 + $0x58] sm:$0xff]
  %v1271 = vld [vmem:[#allocation2 + $0x60] sm:$0xff]
  %v1272 = vld [vmem:[#allocation2 + $0x68] sm:$0xff]
  %v1273 = vld [vmem:[#allocation2 + $0x70] sm:$0xff]
  %v1274 = vld [vmem:[#allocation2 + $0x78] sm:$0xff]
  %v1275 = vld [vmem:[#allocation2 + $0x80] sm:$0xff]
  %v1276 = vld [vmem:[#allocation2 + $0x88] sm:$0xff]
  %v1277 = vld [vmem:[#allocation2 + $0x90] sm:$0xff]
  %v1278 = vld [vmem:[#allocation2 + $0x98] sm:$0xff]
  %v1279 = vld [vmem:[#allocation2 + $0xa0] sm:$0xff]
  %v1280 = vld [vmem:[#allocation2 + $0xa8] sm:$0xff]
  %v1281 = vld [vmem:[#allocation2 + $0xb0] sm:$0xff]
  %v1282 = vld [vmem:[#allocation2 + $0xb8] sm:$0xff]
  %v1283 = vld [vmem:[#allocation2 + $0xc0] sm:$0xff]
  %v1284 = vld [vmem:[#allocation2 + $0xc8] sm:$0xff]
  %v1285 = vld [vmem:[#allocation2 + $0xd0] sm:$0xff]
  %v1286 = vld [vmem:[%s2] sm:$0xff]
  %v1287 = vld [vmem:[%s2 + $0x8] sm:$0xff]
  %v1288 = vld [vmem:[%s2 + $0x10] sm:$0xff]
  %v1289 = vld [vmem:[%s2 + $0x18] sm:$0xff]
  %1291 = vset.pattern.permute.xlu0 0
  %1292 = vperm.xlu0 %1291, %v1286
  %v1293 = vpop.permute.xlu0 %1292
  %1296 = vset.pattern.permute.xlu0 0
  %1297 = vperm.xlu0 %1296, %v1287
  %v1298 = vpop.permute.xlu0 %1297
  %1301 = vset.pattern.permute.xlu0 0
  %1302 = vperm.xlu0 %1301, %v1288
  %v1303 = vpop.permute.xlu0 %1302
  %1306 = vset.pattern.permute.xlu0 0
  %1307 = vperm.xlu0 %1306, %v1289
  %v1308 = vpop.permute.xlu0 %1307
  %1310 = vmatprep.subr.mxu0 %v1260
  %1311 = vmatpush1.msra.mxu0 %v1259
  %1312 = vmatprep.subr.mxu0 %v1263
  %1313 = vmatpush1.msra.mxu0 %v1262
  %1314 = vmatprep.subr.mxu0 %v1266
  %1315 = vmatpush1.msra.mxu0 %v1265
  %1316 = vmatprep.subr.mxu0 %v1269
  %1317 = vmatpush1.msra.mxu0 %v1268
  %1318 = vmatprep.subr.mxu0 %v1272
  %1319 = vmatpush1.msra.mxu0 %v1271
  %1320 = vmatprep.subr.mxu0 %v1275
  %1321 = vmatpush1.msra.mxu0 %v1274
  %1322 = vmatprep.subr.mxu0 %v1278
  %1323 = vmatpush1.msra.mxu0 %v1277
  %1324 = vmatprep.subr.mxu0 %v1281
  %1325 = vmatpush1.msra.mxu0 %v1280
  %1326 = vmatprep.subr.mxu0 %v1284
  %1327 = vmatpush1.msra.mxu0 %v1283
  %1328 = vmatprep.subr.mxu0 0.0
  %1329 = vmatpush1.msra.mxu0 0.0
  %1330 = vmatprep.subr.mxu0 0.0
  %1331 = vmatpush1.msra.mxu0 0.0
  %1332 = vmatprep.subr.mxu0 0.0
  %1333 = vmatpush1.msra.mxu0 0.0
  %1334 = vmatprep.subr.mxu0 0.0
  %1335 = vmatpush1.msra.mxu0 0.0
  %1336 = vmatprep.subr.mxu0 0.0
  %1337 = vmatpush1.msra.mxu0 0.0
  %1338 = vmatprep.subr.mxu0 0.0
  %1339 = vmatpush1.msra.mxu0 0.0
  %1340 = vmatprep.subr.mxu0 0.0
  %1341 = vmatpush1.msra.mxu0 0.0
  %1342 = vmatprep.subr.mxu0 0.0
  %1343 = vmatpush1.msra.mxu0 0.0
  %1344 = vmatprep.subr.mxu0 0.0
  %1345 = vmatpush1.msra.mxu0 0.0
  %1346 = vmatprep.subr.mxu0 0.0
  %1347 = vmatpush1.msra.mxu0 0.0
  %1348 = vmatprep.subr.mxu0 0.0
  %1349 = vmatpush1.msra.mxu0 0.0
  %1350 = vmatprep.subr.mxu0 0.0
  %1351 = vmatpush1.msra.mxu0 0.0
  %1352 = vmatprep.subr.mxu0 0.0
  %1353 = vmatpush1.msra.mxu0 0.0
  %1354 = vmatprep.subr.mxu0 0.0
  %1355 = vmatpush1.msra.mxu0 0.0
  %1356 = vmatprep.subr.mxu0 0.0
  %1357 = vmatpush1.msra.mxu0 0.0
  %1358 = vmatprep.subr.mxu0 0.0
  %1359 = vmatpush1.msra.mxu0 0.0
  %1360 = vmatprep.subr.mxu0 0.0
  %1361 = vmatpush1.msra.mxu0 0.0
  %1362 = vmatprep.subr.mxu0 0.0
  %1363 = vmatpush1.msra.mxu0 0.0
  %1364 = vmatprep.subr.mxu0 0.0
  %1365 = vmatpush1.msra.mxu0 0.0
  %1366 = vmatprep.subr.mxu0 0.0
  %1367 = vmatpush1.msra.mxu0 0.0
  %1368 = vmatprep.subr.mxu0 0.0
  %1369 = vmatpush1.msra.mxu0 0.0
  %1370 = vmatprep.subr.mxu0 0.0
  %1371 = vmatpush1.msra.mxu0 0.0
  %1372 = vmatprep.subr.mxu0 0.0
  %1373 = vmatpush1.msra.mxu0 0.0
  %1374 = vmatprep.mubr.f32.mxu0 0.0
  %1375 = vmatmul.mubr.f32.gmra.mrb[0].mxu0 %v307
  %v1376 = vpop.f32.mrb[0].mxu0
  %v1377 = vadd.f32 %v1293, %v1376
  %v1378 = vpop.f32.mrb[0].mxu0
  %v1379 = vadd.f32 %v1293, %v1378
  %1380 = vmatprep.mubr.f32.mxu0 0.0
  %1381 = vmatmul.mubr.f32.gmra.mrb[0].mxu0 %v310
  %v1382 = vpop.f32.mrb[0].mxu0
  %v1383 = vadd.f32 %v1298, %v1382
  %v1384 = vpop.f32.mrb[0].mxu0
  %v1385 = vadd.f32 %v1298, %v1384
  %1386 = vmatprep.mubr.f32.mxu0 0.0
  %1387 = vmatmul.mubr.f32.gmra.mrb[0].mxu0 %v313
  %v1388 = vpop.f32.mrb[0].mxu0
  %v1389 = vadd.f32 %v1303, %v1388
  %v1390 = vpop.f32.mrb[0].mxu0
  %v1391 = vadd.f32 %v1303, %v1390
  %1392 = vmatprep.mubr.f32.mxu0 0.0
  %1393 = vmatmul.mubr.f32.gmra.mrb[0].mxu0 %v316
  %v1394 = vpop.f32.mrb[0].mxu0
  %v1395 = vadd.f32 %v1308, %v1394
  %v1396 = vpop.f32.mrb[0].mxu0
  %v1397 = vadd.f32 %v1308, %v1396
  %1398 = vdwg.mxu0
  %1399 = vmatprep.subr.mxu0 0.0
  %1400 = vmatpush1.msra.mxu0 %v1261
  %1401 = vmatprep.subr.mxu0 0.0
  %1402 = vmatpush1.msra.mxu0 %v1264
  %1403 = vmatprep.subr.mxu0 0.0
  %1404 = vmatpush1.msra.mxu0 %v1267
  %1405 = vmatprep.subr.mxu0 0.0
  %1406 = vmatpush1.msra.mxu0 %v1270
  %1407 = vmatprep.subr.mxu0 0.0
  %1408 = vmatpush1.msra.mxu0 %v1273
  %1409 = vmatprep.subr.mxu0 0.0
  %1410 = vmatpush1.msra.mxu0 %v1276
  %1411 = vmatprep.subr.mxu0 0.0
  %1412 = vmatpush1.msra.mxu0 %v1279
  %1413 = vmatprep.subr.mxu0 0.0
  %1414 = vmatpush1.msra.mxu0 %v1282
  %1415 = vmatprep.subr.mxu0 0.0
  %1416 = vmatpush1.msra.mxu0 %v1285
  %1417 = vmatprep.subr.mxu0 0.0
  %1418 = vmatpush1.msra.mxu0 0.0
  %1419 = vmatprep.subr.mxu0 0.0
  %1420 = vmatpush1.msra.mxu0 0.0
  %1421 = vmatprep.subr.mxu0 0.0
  %1422 = vmatpush1.msra.mxu0 0.0
  %1423 = vmatprep.subr.mxu0 0.0
  %1424 = vmatpush1.msra.mxu0 0.0
  %1425 = vmatprep.subr.mxu0 0.0
  %1426 = vmatpush1.msra.mxu0 0.0
  %1427 = vmatprep.subr.mxu0 0.0
  %1428 = vmatpush1.msra.mxu0 0.0
  %1429 = vmatprep.subr.mxu0 0.0
  %1430 = vmatpush1.msra.mxu0 0.0
  %1431 = vmatprep.subr.mxu0 0.0
  %1432 = vmatpush1.msra.mxu0 0.0
  %1433 = vmatprep.subr.mxu0 0.0
  %1434 = vmatpush1.msra.mxu0 0.0
  %1435 = vmatprep.subr.mxu0 0.0
  %1436 = vmatpush1.msra.mxu0 0.0
  %1437 = vmatprep.subr.mxu0 0.0
  %1438 = vmatpush1.msra.mxu0 0.0
  %1439 = vmatprep.subr.mxu0 0.0
  %1440 = vmatpush1.msra.mxu0 0.0
  %1441 = vmatprep.subr.mxu0 0.0
  %1442 = vmatpush1.msra.mxu0 0.0
  %1443 = vmatprep.subr.mxu0 0.0
  %1444 = vmatpush1.msra.mxu0 0.0
  %1445 = vmatprep.subr.mxu0 0.0
  %1446 = vmatpush1.msra.mxu0 0.0
  %1447 = vmatprep.subr.mxu0 0.0
  %1448 = vmatpush1.msra.mxu0 0.0
  %1449 = vmatprep.subr.mxu0 0.0
  %1450 = vmatpush1.msra.mxu0 0.0
  %1451 = vmatprep.subr.mxu0 0.0
  %1452 = vmatpush1.msra.mxu0 0.0
  %1453 = vmatprep.subr.mxu0 0.0
  %1454 = vmatpush1.msra.mxu0 0.0
  %1455 = vmatprep.subr.mxu0 0.0
  %1456 = vmatpush1.msra.mxu0 0.0
  %1457 = vmatprep.subr.mxu0 0.0
  %1458 = vmatpush1.msra.mxu0 0.0
  %1459 = vmatprep.subr.mxu0 0.0
  %1460 = vmatpush1.msra.mxu0 0.0
  %1461 = vmatprep.subr.mxu0 0.0
  %1462 = vmatpush1.msra.mxu0 0.0
  %1463 = vmatprep.mubr.f32.mxu0 0.0
  %1464 = vmatmul.mubr.f32.gmra.mrb[0].mxu0 %v307
  %v1465 = vpop.f32.mrb[0].mxu0
  %v1466 = vadd.f32 %v1293, %v1465
  %v1467 = vpop.f32.mrb[0].mxu0
  %1468 = vmatprep.mubr.f32.mxu0 0.0
  %1469 = vmatmul.mubr.f32.gmra.mrb[0].mxu0 %v310
  %v1470 = vpop.f32.mrb[0].mxu0
  %v1471 = vadd.f32 %v1298, %v1470
  %v1472 = vpop.f32.mrb[0].mxu0
  %1473 = vmatprep.mubr.f32.mxu0 0.0
  %1474 = vmatmul.mubr.f32.gmra.mrb[0].mxu0 %v313
  %v1475 = vpop.f32.mrb[0].mxu0
  %v1476 = vadd.f32 %v1303, %v1475
  %v1477 = vpop.f32.mrb[0].mxu0
  %1478 = vmatprep.mubr.f32.mxu0 0.0
  %1479 = vmatmul.mubr.f32.gmra.mrb[0].mxu0 %v316
  %v1480 = vpop.f32.mrb[0].mxu0
  %v1481 = vadd.f32 %v1308, %v1480
  %v1482 = vpop.f32.mrb[0].mxu0
  %1483 = vdwg.mxu0
  %v1484 = vmul.f32 %v1377, %v496
  %v1485 = vmul.f32 %v1379, %v500
  %v1486 = vmul.f32 %v1466, %v504
  %v1487 = vmul.f32 %v1383, %v496
  %v1488 = vmul.f32 %v1385, %v500
  %v1489 = vmul.f32 %v1471, %v504
  %v1490 = vmul.f32 %v1389, %v496
  %v1491 = vmul.f32 %v1391, %v500
  %v1492 = vmul.f32 %v1476, %v504
  %v1493 = vmul.f32 %v1395, %v496
  %v1494 = vmul.f32 %v1397, %v500
  %v1495 = vmul.f32 %v1481, %v504
  %v1496 = vadd.f32 %v1484, %v1485
  %v1497 = vadd.f32 %v1496, %v1486
  %1498 = vadd.xlane.f32.xlu0 %v1497
  %v1499 = vpop.xlane.xlu0 %1498
  %v1500 = vadd.f32 %v1487, %v1488
  %v1501 = vadd.f32 %v1500, %v1489
  %1502 = vadd.xlane.f32.xlu0 %v1501
  %v1503 = vpop.xlane.xlu0 %1502
  %v1504 = vadd.f32 %v1490, %v1491
  %v1505 = vadd.f32 %v1504, %v1492
  %1506 = vadd.xlane.f32.xlu0 %v1505
  %v1507 = vpop.xlane.xlu0 %1506
  %v1508 = vadd.f32 %v1493, %v1494
  %v1509 = vadd.f32 %v1508, %v1495
  %1510 = vadd.xlane.f32.xlu0 %v1509
  %v1511 = vpop.xlane.xlu0 %1510
  %1512 = vmatprep.subr.mxu0 0.0
  %1513 = vmatpush1.msra.mxu0 %v1499
  %1514 = vmatprep.subr.mxu0 0.0
  %1515 = vmatpush1.msra.mxu0 %v1503
  %1516 = vmatprep.subr.mxu0 0.0
  %1517 = vmatpush1.msra.mxu0 %v1507
  %1518 = vmatprep.subr.mxu0 0.0
  %1519 = vmatpush1.msra.mxu0 %v1511
  %1520 = vmatprep.subr.mxu0 0.0
  %1521 = vmatpush1.msra.mxu0 0.0
  %1522 = vmatprep.subr.mxu0 0.0
  %1523 = vmatpush1.msra.mxu0 0.0
  %1524 = vmatprep.subr.mxu0 0.0
  %1525 = vmatpush1.msra.mxu0 0.0
  %1526 = vmatprep.subr.mxu0 0.0
  %1527 = vmatpush1.msra.mxu0 0.0
  %1528 = vmatprep.subr.mxu0 0.0
  %1529 = vmatpush1.msra.mxu0 0.0
  %1530 = vmatprep.subr.mxu0 0.0
  %1531 = vmatpush1.msra.mxu0 0.0
  %1532 = vmatprep.subr.mxu0 0.0
  %1533 = vmatpush1.msra.mxu0 0.0
  %1534 = vmatprep.subr.mxu0 0.0
  %1535 = vmatpush1.msra.mxu0 0.0
  %1536 = vmatprep.subr.mxu0 0.0
  %1537 = vmatpush1.msra.mxu0 0.0
  %1538 = vmatprep.subr.mxu0 0.0
  %1539 = vmatpush1.msra.mxu0 0.0
  %1540 = vmatprep.subr.mxu0 0.0
  %1541 = vmatpush1.msra.mxu0 0.0
  %1542 = vmatprep.subr.mxu0 0.0
  %1543 = vmatpush1.msra.mxu0 0.0
  %1544 = vmatprep.subr.mxu0 0.0
  %1545 = vmatpush1.msra.mxu0 0.0
  %1546 = vmatprep.subr.mxu0 0.0
  %1547 = vmatpush1.msra.mxu0 0.0
  %1548 = vmatprep.subr.mxu0 0.0
  %1549 = vmatpush1.msra.mxu0 0.0
  %1550 = vmatprep.subr.mxu0 0.0
  %1551 = vmatpush1.msra.mxu0 0.0
  %1552 = vmatprep.subr.mxu0 0.0
  %1553 = vmatpush1.msra.mxu0 0.0
  %1554 = vmatprep.subr.mxu0 0.0
  %1555 = vmatpush1.msra.mxu0 0.0
  %1556 = vmatprep.subr.mxu0 0.0
  %1557 = vmatpush1.msra.mxu0 0.0
  %1558 = vmatprep.subr.mxu0 0.0
  %1559 = vmatpush1.msra.mxu0 0.0
  %1560 = vmatprep.subr.mxu0 0.0
  %1561 = vmatpush1.msra.mxu0 0.0
  %1562 = vmatprep.subr.mxu0 0.0
  %1563 = vmatpush1.msra.mxu0 0.0
  %1564 = vmatprep.subr.mxu0 0.0
  %1565 = vmatpush1.msra.mxu0 0.0
  %1566 = vmatprep.subr.mxu0 0.0
  %1567 = vmatpush1.msra.mxu0 0.0
  %1568 = vmatprep.subr.mxu0 0.0
  %1569 = vmatpush1.msra.mxu0 0.0
  %1570 = vmatprep.subr.mxu0 0.0
  %1571 = vmatpush1.msra.mxu0 0.0
  %1572 = vmatprep.subr.mxu0 0.0
  %1573 = vmatpush1.msra.mxu0 0.0
  %1574 = vmatprep.subr.mxu0 0.0
  %1575 = vmatpush1.msra.mxu0 0.0
  %1576 = vmatprep.mubr.f32.mxu0 0.0
  %1577 = vmatmul.mubr.f32.gmra.mrb[0].mxu0 %v538
  %v1578 = vpop.f32.mrb[0].mxu0
  %v1579 = vadd.f32 0.0, %v1578
  %v1580 = vpop.f32.mrb[0].mxu0
  %1581 = vmatprep.mubr.f32.mxu0 0.0
  %1582 = vmatmul.mubr.f32.gmra.mrb[0].mxu0 %v541
  %v1583 = vpop.f32.mrb[0].mxu0
  %v1584 = vadd.f32 0.0, %v1583
  %v1585 = vpop.f32.mrb[0].mxu0
  %1586 = vdwg.mxu0
  %1587 = vmatprep.subr.mxu0 0.0
  %1588 = vmatpush1.msra.mxu0 %v1579
  %1589 = vmatprep.subr.mxu0 0.0
  %1590 = vmatpush1.msra.mxu0 %v1584
  %1591 = vmatprep.subr.mxu0 0.0
  %1592 = vmatpush1.msra.mxu0 0.0
  %1593 = vmatprep.subr.mxu0 0.0
  %1594 = vmatpush1.msra.mxu0 0.0
  %1595 = vmatprep.subr.mxu0 0.0
  %1596 = vmatpush1.msra.mxu0 0.0
  %1597 = vmatprep.subr.mxu0 0.0
  %1598 = vmatpush1.msra.mxu0 0.0
  %1599 = vmatprep.subr.mxu0 0.0
  %1600 = vmatpush1.msra.mxu0 0.0
  %1601 = vmatprep.subr.mxu0 0.0
  %1602 = vmatpush1.msra.mxu0 0.0
  %1603 = vmatprep.subr.mxu0 0.0
  %1604 = vmatpush1.msra.mxu0 0.0
  %1605 = vmatprep.subr.mxu0 0.0
  %1606 = vmatpush1.msra.mxu0 0.0
  %1607 = vmatprep.subr.mxu0 0.0
  %1608 = vmatpush1.msra.mxu0 0.0
  %1609 = vmatprep.subr.mxu0 0.0
  %1610 = vmatpush1.msra.mxu0 0.0
  %1611 = vmatprep.subr.mxu0 0.0
  %1612 = vmatpush1.msra.mxu0 0.0
  %1613 = vmatprep.subr.mxu0 0.0
  %1614 = vmatpush1.msra.mxu0 0.0
  %1615 = vmatprep.subr.mxu0 0.0
  %1616 = vmatpush1.msra.mxu0 0.0
  %1617 = vmatprep.subr.mxu0 0.0
  %1618 = vmatpush1.msra.mxu0 0.0
  %1619 = vmatprep.subr.mxu0 0.0
  %1620 = vmatpush1.msra.mxu0 0.0
  %1621 = vmatprep.subr.mxu0 0.0
  %1622 = vmatpush1.msra.mxu0 0.0
  %1623 = vmatprep.subr.mxu0 0.0
  %1624 = vmatpush1.msra.mxu0 0.0
  %1625 = vmatprep.subr.mxu0 0.0
  %1626 = vmatpush1.msra.mxu0 0.0
  %1627 = vmatprep.subr.mxu0 0.0
  %1628 = vmatpush1.msra.mxu0 0.0
  %1629 = vmatprep.subr.mxu0 0.0
  %1630 = vmatpush1.msra.mxu0 0.0
  %1631 = vmatprep.subr.mxu0 0.0
  %1632 = vmatpush1.msra.mxu0 0.0
  %1633 = vmatprep.subr.mxu0 0.0
  %1634 = vmatpush1.msra.mxu0 0.0
  %1635 = vmatprep.subr.mxu0 0.0
  %1636 = vmatpush1.msra.mxu0 0.0
  %1637 = vmatprep.subr.mxu0 0.0
  %1638 = vmatpush1.msra.mxu0 0.0
  %1639 = vmatprep.subr.mxu0 0.0
  %1640 = vmatpush1.msra.mxu0 0.0
  %1641 = vmatprep.subr.mxu0 0.0
  %1642 = vmatpush1.msra.mxu0 0.0
  %1643 = vmatprep.subr.mxu0 0.0
  %1644 = vmatpush1.msra.mxu0 0.0
  %1645 = vmatprep.subr.mxu0 0.0
  %1646 = vmatpush1.msra.mxu0 0.0
  %1647 = vmatprep.subr.mxu0 0.0
  %1648 = vmatpush1.msra.mxu0 0.0
  %1649 = vmatprep.subr.mxu0 0.0
  %1650 = vmatpush1.msra.mxu0 0.0
  %1651 = vmatprep.mubr.f32.mxu0 0.0
  %1652 = vmatmul.mubr.f32.gmra.mrb[0].mxu0 %v620
  %v1653 = vpop.f32.mrb[0].mxu0
  %v1654 = vadd.f32 0.0, %v1653
  %v1655 = vpop.f32.mrb[0].mxu0
  %1656 = vmatprep.mubr.f32.mxu0 0.0
  %1657 = vmatmul.mubr.f32.gmra.mrb[0].mxu0 %v623
  %v1658 = vpop.f32.mrb[0].mxu0
  %v1659 = vadd.f32 0.0, %v1658
  %v1660 = vpop.f32.mrb[0].mxu0
  %1661 = vmatprep.mubr.f32.mxu0 0.0
  %1662 = vmatmul.mubr.f32.gmra.mrb[0].mxu0 %v626
  %v1663 = vpop.f32.mrb[0].mxu0
  %v1664 = vadd.f32 0.0, %v1663
  %v1665 = vpop.f32.mrb[0].mxu0
  %1666 = vmatprep.mubr.f32.mxu0 0.0
  %1667 = vmatmul.mubr.f32.gmra.mrb[0].mxu0 %v629
  %v1668 = vpop.f32.mrb[0].mxu0
  %v1669 = vadd.f32 0.0, %v1668
  %v1670 = vpop.f32.mrb[0].mxu0
  %1671 = vdwg.mxu0
  %v1672 = vmul.f32 %v1654, 0.001953125
  %v1673 = vmul.f32 %v1659, 0.001953125
  %v1674 = vmul.f32 %v1664, 0.001953125
  %v1675 = vmul.f32 %v1669, 0.001953125
  %1677 = vset.pattern.permute.xlu0 0
  %1678 = vperm.xlu0 %1677, %v1672
  %v1679 = vpop.permute.xlu0 %1678
  %1682 = vset.pattern.permute.xlu0 0
  %1683 = vperm.xlu0 %1682, %v1673
  %v1684 = vpop.permute.xlu0 %1683
  %1687 = vset.pattern.permute.xlu0 0
  %1688 = vperm.xlu0 %1687, %v1674
  %v1689 = vpop.permute.xlu0 %1688
  %1692 = vset.pattern.permute.xlu0 0
  %1693 = vperm.xlu0 %1692, %v1675
  %v1694 = vpop.permute.xlu0 %1693
  %v1696 = vsub.f32 %v1377, %v1679
  %v1697 = vsub.f32 %v1379, %v1679
  %v1698 = vsub.f32 %v1466, %v1679
  %v1699 = vsub.f32 %v1383, %v1684
  %v1700 = vsub.f32 %v1385, %v1684
  %v1701 = vsub.f32 %v1471, %v1684
  %v1702 = vsub.f32 %v1389, %v1689
  %v1703 = vsub.f32 %v1391, %v1689
  %v1704 = vsub.f32 %v1476, %v1689
  %v1705 = vsub.f32 %v1395, %v1694
  %v1706 = vsub.f32 %v1397, %v1694
  %v1707 = vsub.f32 %v1481, %v1694
  %v1708 = vmul.f32 %v1696, %v1696
  %v1709 = vmul.f32 %v1697, %v1697
  %v1710 = vmul.f32 %v1698, %v1698
  %v1711 = vmul.f32 %v1699, %v1699
  %v1712 = vmul.f32 %v1700, %v1700
  %v1713 = vmul.f32 %v1701, %v1701
  %v1714 = vmul.f32 %v1702, %v1702
  %v1715 = vmul.f32 %v1703, %v1703
  %v1716 = vmul.f32 %v1704, %v1704
  %v1717 = vmul.f32 %v1705, %v1705
  %v1718 = vmul.f32 %v1706, %v1706
  %v1719 = vmul.f32 %v1707, %v1707
  %v1720 = vmul.f32 %v1708, %v496
  %v1721 = vmul.f32 %v1709, %v500
  %v1722 = vmul.f32 %v1710, %v504
  %v1723 = vmul.f32 %v1711, %v496
  %v1724 = vmul.f32 %v1712, %v500
  %v1725 = vmul.f32 %v1713, %v504
  %v1726 = vmul.f32 %v1714, %v496
  %v1727 = vmul.f32 %v1715, %v500
  %v1728 = vmul.f32 %v1716, %v504
  %v1729 = vmul.f32 %v1717, %v496
  %v1730 = vmul.f32 %v1718, %v500
  %v1731 = vmul.f32 %v1719, %v504
  %v1732 = vadd.f32 %v1720, %v1721
  %v1733 = vadd.f32 %v1732, %v1722
  %1734 = vadd.xlane.f32.xlu0 %v1733
  %v1735 = vpop.xlane.xlu0 %1734
  %v1736 = vadd.f32 %v1723, %v1724
  %v1737 = vadd.f32 %v1736, %v1725
  %1738 = vadd.xlane.f32.xlu0 %v1737
  %v1739 = vpop.xlane.xlu0 %1738
  %v1740 = vadd.f32 %v1726, %v1727
  %v1741 = vadd.f32 %v1740, %v1728
  %1742 = vadd.xlane.f32.xlu0 %v1741
  %v1743 = vpop.xlane.xlu0 %1742
  %v1744 = vadd.f32 %v1729, %v1730
  %v1745 = vadd.f32 %v1744, %v1731
  %1746 = vadd.xlane.f32.xlu0 %v1745
  %v1747 = vpop.xlane.xlu0 %1746
  %1748 = vmatprep.subr.mxu0 0.0
  %1749 = vmatpush1.msra.mxu0 %v1735
  %1750 = vmatprep.subr.mxu0 0.0
  %1751 = vmatpush1.msra.mxu0 %v1739
  %1752 = vmatprep.subr.mxu0 0.0
  %1753 = vmatpush1.msra.mxu0 %v1743
  %1754 = vmatprep.subr.mxu0 0.0
  %1755 = vmatpush1.msra.mxu0 %v1747
  %1756 = vmatprep.subr.mxu0 0.0
  %1757 = vmatpush1.msra.mxu0 0.0
  %1758 = vmatprep.subr.mxu0 0.0
  %1759 = vmatpush1.msra.mxu0 0.0
  %1760 = vmatprep.subr.mxu0 0.0
  %1761 = vmatpush1.msra.mxu0 0.0
  %1762 = vmatprep.subr.mxu0 0.0
  %1763 = vmatpush1.msra.mxu0 0.0
  %1764 = vmatprep.subr.mxu0 0.0
  %1765 = vmatpush1.msra.mxu0 0.0
  %1766 = vmatprep.subr.mxu0 0.0
  %1767 = vmatpush1.msra.mxu0 0.0
  %1768 = vmatprep.subr.mxu0 0.0
  %1769 = vmatpush1.msra.mxu0 0.0
  %1770 = vmatprep.subr.mxu0 0.0
  %1771 = vmatpush1.msra.mxu0 0.0
  %1772 = vmatprep.subr.mxu0 0.0
  %1773 = vmatpush1.msra.mxu0 0.0
  %1774 = vmatprep.subr.mxu0 0.0
  %1775 = vmatpush1.msra.mxu0 0.0
  %1776 = vmatprep.subr.mxu0 0.0
  %1777 = vmatpush1.msra.mxu0 0.0
  %1778 = vmatprep.subr.mxu0 0.0
  %1779 = vmatpush1.msra.mxu0 0.0
  %1780 = vmatprep.subr.mxu0 0.0
  %1781 = vmatpush1.msra.mxu0 0.0
  %1782 = vmatprep.subr.mxu0 0.0
  %1783 = vmatpush1.msra.mxu0 0.0
  %1784 = vmatprep.subr.mxu0 0.0
  %1785 = vmatpush1.msra.mxu0 0.0
  %1786 = vmatprep.subr.mxu0 0.0
  %1787 = vmatpush1.msra.mxu0 0.0
  %1788 = vmatprep.subr.mxu0 0.0
  %1789 = vmatpush1.msra.mxu0 0.0
  %1790 = vmatprep.subr.mxu0 0.0
  %1791 = vmatpush1.msra.mxu0 0.0
  %1792 = vmatprep.subr.mxu0 0.0
  %1793 = vmatpush1.msra.mxu0 0.0
  %1794 = vmatprep.subr.mxu0 0.0
  %1795 = vmatpush1.msra.mxu0 0.0
  %1796 = vmatprep.subr.mxu0 0.0
  %1797 = vmatpush1.msra.mxu0 0.0
  %1798 = vmatprep.subr.mxu0 0.0
  %1799 = vmatpush1.msra.mxu0 0.0
  %1800 = vmatprep.subr.mxu0 0.0
  %1801 = vmatpush1.msra.mxu0 0.0
  %1802 = vmatprep.subr.mxu0 0.0
  %1803 = vmatpush1.msra.mxu0 0.0
  %1804 = vmatprep.subr.mxu0 0.0
  %1805 = vmatpush1.msra.mxu0 0.0
  %1806 = vmatprep.subr.mxu0 0.0
  %1807 = vmatpush1.msra.mxu0 0.0
  %1808 = vmatprep.subr.mxu0 0.0
  %1809 = vmatpush1.msra.mxu0 0.0
  %1810 = vmatprep.subr.mxu0 0.0
  %1811 = vmatpush1.msra.mxu0 0.0
  %1812 = vmatprep.mubr.f32.mxu0 0.0
  %1813 = vmatmul.mubr.f32.gmra.mrb[0].mxu0 %v538
  %v1814 = vpop.f32.mrb[0].mxu0
  %v1815 = vadd.f32 0.0, %v1814
  %v1816 = vpop.f32.mrb[0].mxu0
  %1817 = vmatprep.mubr.f32.mxu0 0.0
  %1818 = vmatmul.mubr.f32.gmra.mrb[0].mxu0 %v541
  %v1819 = vpop.f32.mrb[0].mxu0
  %v1820 = vadd.f32 0.0, %v1819
  %v1821 = vpop.f32.mrb[0].mxu0
  %1822 = vdwg.mxu0
  %1823 = vmatprep.subr.mxu0 0.0
  %1824 = vmatpush1.msra.mxu0 %v1815
  %1825 = vmatprep.subr.mxu0 0.0
  %1826 = vmatpush1.msra.mxu0 %v1820
  %1827 = vmatprep.subr.mxu0 0.0
  %1828 = vmatpush1.msra.mxu0 0.0
  %1829 = vmatprep.subr.mxu0 0.0
  %1830 = vmatpush1.msra.mxu0 0.0
  %1831 = vmatprep.subr.mxu0 0.0
  %1832 = vmatpush1.msra.mxu0 0.0
  %1833 = vmatprep.subr.mxu0 0.0
  %1834 = vmatpush1.msra.mxu0 0.0
  %1835 = vmatprep.subr.mxu0 0.0
  %1836 = vmatpush1.msra.mxu0 0.0
  %1837 = vmatprep.subr.mxu0 0.0
  %1838 = vmatpush1.msra.mxu0 0.0
  %1839 = vmatprep.subr.mxu0 0.0
  %1840 = vmatpush1.msra.mxu0 0.0
  %1841 = vmatprep.subr.mxu0 0.0
  %1842 = vmatpush1.msra.mxu0 0.0
  %1843 = vmatprep.subr.mxu0 0.0
  %1844 = vmatpush1.msra.mxu0 0.0
  %1845 = vmatprep.subr.mxu0 0.0
  %1846 = vmatpush1.msra.mxu0 0.0
  %1847 = vmatprep.subr.mxu0 0.0
  %1848 = vmatpush1.msra.mxu0 0.0
  %1849 = vmatprep.subr.mxu0 0.0
  %1850 = vmatpush1.msra.mxu0 0.0
  %1851 = vmatprep.subr.mxu0 0.0
  %1852 = vmatpush1.msra.mxu0 0.0
  %1853 = vmatprep.subr.mxu0 0.0
  %1854 = vmatpush1.msra.mxu0 0.0
  %1855 = vmatprep.subr.mxu0 0.0
  %1856 = vmatpush1.msra.mxu0 0.0
  %1857 = vmatprep.subr.mxu0 0.0
  %1858 = vmatpush1.msra.mxu0 0.0
  %1859 = vmatprep.subr.mxu0 0.0
  %1860 = vmatpush1.msra.mxu0 0.0
  %1861 = vmatprep.subr.mxu0 0.0
  %1862 = vmatpush1.msra.mxu0 0.0
  %1863 = vmatprep.subr.mxu0 0.0
  %1864 = vmatpush1.msra.mxu0 0.0
  %1865 = vmatprep.subr.mxu0 0.0
  %1866 = vmatpush1.msra.mxu0 0.0
  %1867 = vmatprep.subr.mxu0 0.0
  %1868 = vmatpush1.msra.mxu0 0.0
  %1869 = vmatprep.subr.mxu0 0.0
  %1870 = vmatpush1.msra.mxu0 0.0
  %1871 = vmatprep.subr.mxu0 0.0
  %1872 = vmatpush1.msra.mxu0 0.0
  %1873 = vmatprep.subr.mxu0 0.0
  %1874 = vmatpush1.msra.mxu0 0.0
  %1875 = vmatprep.subr.mxu0 0.0
  %1876 = vmatpush1.msra.mxu0 0.0
  %1877 = vmatprep.subr.mxu0 0.0
  %1878 = vmatpush1.msra.mxu0 0.0
  %1879 = vmatprep.subr.mxu0 0.0
  %1880 = vmatpush1.msra.mxu0 0.0
  %1881 = vmatprep.subr.mxu0 0.0
  %1882 = vmatpush1.msra.mxu0 0.0
  %1883 = vmatprep.subr.mxu0 0.0
  %1884 = vmatpush1.msra.mxu0 0.0
  %1885 = vmatprep.subr.mxu0 0.0
  %1886 = vmatpush1.msra.mxu0 0.0
  %1887 = vmatprep.mubr.f32.mxu0 0.0
  %1888 = vmatmul.mubr.f32.gmra.mrb[0].mxu0 %v620
  %v1889 = vpop.f32.mrb[0].mxu0
  %v1890 = vadd.f32 0.0, %v1889
  %v1891 = vpop.f32.mrb[0].mxu0
  %1892 = vmatprep.mubr.f32.mxu0 0.0
  %1893 = vmatmul.mubr.f32.gmra.mrb[0].mxu0 %v623
  %v1894 = vpop.f32.mrb[0].mxu0
  %v1895 = vadd.f32 0.0, %v1894
  %v1896 = vpop.f32.mrb[0].mxu0
  %1897 = vmatprep.mubr.f32.mxu0 0.0
  %1898 = vmatmul.mubr.f32.gmra.mrb[0].mxu0 %v626
  %v1899 = vpop.f32.mrb[0].mxu0
  %v1900 = vadd.f32 0.0, %v1899
  %v1901 = vpop.f32.mrb[0].mxu0
  %1902 = vmatprep.mubr.f32.mxu0 0.0
  %1903 = vmatmul.mubr.f32.gmra.mrb[0].mxu0 %v629
  %v1904 = vpop.f32.mrb[0].mxu0
  %v1905 = vadd.f32 0.0, %v1904
  %v1906 = vpop.f32.mrb[0].mxu0
  %1907 = vdwg.mxu0
  %v1908 = vmul.f32 %v1890, 0.001953125
  %v1909 = vmul.f32 %v1895, 0.001953125
  %v1910 = vmul.f32 %v1900, 0.001953125
  %v1911 = vmul.f32 %v1905, 0.001953125
  %v1912 = vadd.f32 %v1908, 1e-05
  %v1913 = vadd.f32 %v1909, 1e-05
  %v1914 = vadd.f32 %v1910, 1e-05
  %v1915 = vadd.f32 %v1911, 1e-05
  %v1916 = vrsqrt.pop %v1912
  %v1917 = vrsqrt.pop %v1913
  %v1918 = vrsqrt.pop %v1914
  %v1919 = vrsqrt.pop %v1915
  %v1920 = vld [vmem:[%s3] sm:$0xff]
  %v1921 = vld [vmem:[%s3 + $0x8] sm:$0xff]
  %v1922 = vld [vmem:[%s3 + $0x10] sm:$0xff]
  %v1923 = vld [vmem:[%s3 + $0x18] sm:$0xff]
  %v1924 = vmul.f32 %v1916, %v1920
  %v1925 = vmul.f32 %v1917, %v1921
  %v1926 = vmul.f32 %v1918, %v1922
  %v1927 = vmul.f32 %v1919, %v1923
  %1929 = vset.pattern.permute.xlu0 0
  %1930 = vperm.xlu0 %1929, %v1924
  %v1931 = vpop.permute.xlu0 %1930
  %1934 = vset.pattern.permute.xlu0 0
  %1935 = vperm.xlu0 %1934, %v1925
  %v1936 = vpop.permute.xlu0 %1935
  %1939 = vset.pattern.permute.xlu0 0
  %1940 = vperm.xlu0 %1939, %v1926
  %v1941 = vpop.permute.xlu0 %1940
  %1944 = vset.pattern.permute.xlu0 0
  %1945 = vperm.xlu0 %1944, %v1927
  %v1946 = vpop.permute.xlu0 %1945
  %v1948 = vmul.f32 %v1696, %v1931
  %v1949 = vmul.f32 %v1697, %v1931
  %v1950 = vmul.f32 %v1698, %v1931
  %v1951 = vmul.f32 %v1699, %v1936
  %v1952 = vmul.f32 %v1700, %v1936
  %v1953 = vmul.f32 %v1701, %v1936
  %v1954 = vmul.f32 %v1702, %v1941
  %v1955 = vmul.f32 %v1703, %v1941
  %v1956 = vmul.f32 %v1704, %v1941
  %v1957 = vmul.f32 %v1705, %v1946
  %v1958 = vmul.f32 %v1706, %v1946
  %v1959 = vmul.f32 %v1707, %v1946
  %v1960 = vld [vmem:[%s4] sm:$0xff]
  %v1961 = vld [vmem:[%s4 + $0x8] sm:$0xff]
  %v1962 = vld [vmem:[%s4 + $0x10] sm:$0xff]
  %v1963 = vld [vmem:[%s4 + $0x18] sm:$0xff]
  %1965 = vset.pattern.permute.xlu0 0
  %1966 = vperm.xlu0 %1965, %v1960
  %v1967 = vpop.permute.xlu0 %1966
  %1970 = vset.pattern.permute.xlu0 0
  %1971 = vperm.xlu0 %1970, %v1961
  %v1972 = vpop.permute.xlu0 %1971
  %1975 = vset.pattern.permute.xlu0 0
  %1976 = vperm.xlu0 %1975, %v1962
  %v1977 = vpop.permute.xlu0 %1976
  %1980 = vset.pattern.permute.xlu0 0
  %1981 = vperm.xlu0 %1980, %v1963
  %v1982 = vpop.permute.xlu0 %1981
  %v1984 = vadd.f32 %v1948, %v1967
  %v1985 = vadd.f32 %v1949, %v1967
  %v1986 = vadd.f32 %v1950, %v1967
  %v1987 = vadd.f32 %v1951, %v1972
  %v1988 = vadd.f32 %v1952, %v1972
  %v1989 = vadd.f32 %v1953, %v1972
  %v1990 = vadd.f32 %v1954, %v1977
  %v1991 = vadd.f32 %v1955, %v1977
  %v1992 = vadd.f32 %v1956, %v1977
  %v1993 = vadd.f32 %v1957, %v1982
  %v1994 = vadd.f32 %v1958, %v1982
  %v1995 = vadd.f32 %v1959, %v1982
  %s1996 = scalar_lea.vmem %s8, 96
  %1997 = vst [vmem:[%s1996] sm:$0xff] %v1984
  %1998 = vst [vmem:[%s1996 + $0x8] sm:$0xff] %v1985
  %1999 = vst [vmem:[%s1996 + $0x10] sm:$0xff] %v1986
  %2000 = vst [vmem:[%s1996 + $0x18] sm:$0xff] %v1987
  %2001 = vst [vmem:[%s1996 + $0x20] sm:$0xff] %v1988
  %2002 = vst [vmem:[%s1996 + $0x28] sm:$0xff] %v1989
  %2003 = vst [vmem:[%s1996 + $0x30] sm:$0xff] %v1990
  %2004 = vst [vmem:[%s1996 + $0x38] sm:$0xff] %v1991
  %2005 = vst [vmem:[%s1996 + $0x40] sm:$0xff] %v1992
  %2006 = vst [vmem:[%s1996 + $0x48] sm:$0xff] %v1993
  %2007 = vst [vmem:[%s1996 + $0x50] sm:$0xff] %v1994
  %2008 = vst [vmem:[%s1996 + $0x58] sm:$0xff] %v1995
  // Predicated region
  $region34: #{conv2d_groupnorm.1} parent=0 // pred_check
    _
  $region35: #{conv2d_groupnorm.1} parent=0 // pred_check_branch
    %2010 = sbr.rel (0) target = $region37
  $region36: #{conv2d_groupnorm.1} parent=0 // pred_region
    _
  $region37: #{conv2d_groupnorm.1} parent=0 // pred_fallthru
    _
  // Predicated region
  $region38: #{conv2d_groupnorm.1} parent=0 // pred_check
    _
  $region39: #{conv2d_groupnorm.1} parent=0 // pred_check_branch
    %2012 = sbr.rel (0) target = $region41
  $region40: #{conv2d_groupnorm.1} parent=0 // pred_region
    _
  $region41: #{conv2d_groupnorm.1} parent=0 // pred_fallthru
    _

</llo_original>
